<compile_context>
chip_gen: v6e
topology: v6e:2x2x1
jax: 0.10.0
libtpu: 0.0.40
codegen_flags: <defaults>
</compile_context>

<pallas_src>
import jax
import jax.numpy as jnp
from jax import lax
from jax.experimental import pallas as pl
from jax.experimental.pallas import tpu as pltpu

INPUT_DIM = 16
HIDDEN_DIM = 32
NUM_LAYERS = 2     # hard-wired to 2 in the kernel below
OUTPUT_DIM = 1
BATCH = 2
SEQ = 8


def _make_kernel(T, Bp, D, H):
    G = 4 * H

    def kernel(x_ref, wrec_ref, misc_ref, out_ref):
        # Unpack the misc slab with static slices (one DMA for all of it).
        misc = misc_ref[...]                         # (D + H + 3, 4H)
        wih0 = misc[0:D, :]                          # (D, 4H)
        wih1 = misc[D:D + H, :]                      # (H, 4H)
        b0 = misc[D + H:D + H + 1, :]                # (1, 4H)  fused b_ih0+b_hh0
        b1 = misc[D + H + 1:D + H + 2, :]            # (1, 4H)  fused b_ih1+b_hh1
        head = misc[D + H + 2:D + H + 3, :]          # (1, 4H)  [wfc | bfc | 0...]
        wfc = head[:, 0:H]                           # (1, H)
        bfc = head[:, H:H + 1]                       # (1, 1)

        wrec = wrec_ref[...]                         # (2H, 8H) blockdiag(whh0, whh1)

        # Hoisted layer-0 input projection (+ fused bias) for all timesteps:
        # one (T*Bp, D) x (D, 4H) MXU push instead of T small ones.
        xg = jnp.dot(x_ref[...], wih0,
                     preferred_element_type=jnp.float32) + b0   # (T*Bp, 4H)

        h0 = jnp.zeros((Bp, H), jnp.float32)
        c0 = jnp.zeros((Bp, H), jnp.float32)
        h1 = jnp.zeros((Bp, H), jnp.float32)
        c1 = jnp.zeros((Bp, H), jnp.float32)

        def cell_update(gates, c):
            # Gate order i, f, g, o (PyTorch semantics).  Sigmoid full-width
            # on the single (Bp, 4H=128) vreg; tanh ONLY on the g lanes.
            sig = jax.nn.sigmoid(gates)
            i = sig[:, 0 * H:1 * H]
            f = sig[:, 1 * H:2 * H]
            o = sig[:, 3 * H:4 * H]
            g = jnp.tanh(gates[:, 2 * H:3 * H])
            c_new = f * c + i * g
            h_new = o * jnp.tanh(c_new)
            return h_new, c_new

        for t in range(T):  # static unroll: T is a compile-time constant
            # Both layers' recurrent matmuls as one (Bp,2H)x(2H,8H) MXU push,
            # using previous-step h's -> off the h0(t)->gates1 critical path.
            hcat = jnp.concatenate([h0, h1], axis=-1)            # (Bp, 2H)
            grec = jnp.dot(hcat, wrec,
                           preferred_element_type=jnp.float32)   # (Bp, 8H)

            # Layer 0: precomputed input projection + aligned 128-lane slice.
            gates0 = xg[t * Bp:(t + 1) * Bp, :] + grec[:, 0:G]
            h0, c0 = cell_update(gates0, c0)

            # TODO(synk): inter-layer dropout (p=0.2) omitted — eval/inference semantics.

            # Layer 1: only h0(t) @ wih1 remains on the serial segment.
            gates1 = (jnp.dot(h0, wih1, preferred_element_type=jnp.float32)
                      + grec[:, G:2 * G] + b1)
            h1, c1 = cell_update(gates1, c1)

        # FC head: VPU multiply + lane reduction (avoids an N=1 MXU push).
        out_ref[...] = (jnp.sum(h1 * wfc, axis=-1, keepdims=True) + bfc)

    return kernel


@jax.jit
def lstm_regressor_forward(x, wrec, misc):
    """x: (B, T, D) float32 (PyTorch batch_first layout). Returns (B,)."""
    B, T, D = x.shape
    H = HIDDEN_DIM
    Bp = ((B + 7) // 8) * 8          # pad batch to a full sublane tile
    if Bp != B:
        x = jnp.pad(x, ((0, Bp - B), (0, 0), (0, 0)))

    # (Bp, T, D) -> (T*Bp, D): batched layer-0 input projection + per-step
    # sublane-aligned 8-row slices inside the kernel.
    x2d = jnp.transpose(x, (1, 0, 2)).reshape(T * Bp, D)

    vmem = pl.BlockSpec(memory_space=pltpu.MemorySpace.VMEM)
    out = pl.pallas_call(
        _make_kernel(T, Bp, D, H),
        out_shape=jax.ShapeDtypeStruct((Bp, OUTPUT_DIM), jnp.float32),
        in_specs=[vmem, vmem, vmem],
        out_specs=vmem,
    )(x2d, wrec, misc)

    return out[:B, 0]  # strip batch pad, squeeze(-1)


def init_params(key):
    """Deterministic params mimicking nn.LSTM/nn.Linear init (uniform +-1/sqrt(H))."""
    H, D = HIDDEN_DIM, INPUT_DIM
    bound = 1.0 / jnp.sqrt(jnp.float32(H))
    ks = jax.random.split(key, 10)
    u = lambda k, shape: jax.random.uniform(k, shape, jnp.float32, -bound, bound)

    return dict(
        wih0=u(ks[0], (D, 4 * H)),
        whh0=u(ks[1], (H, 4 * H)),
        b0=u(ks[2], (1, 4 * H)) + u(ks[3], (1, 4 * H)),     # b_ih0 + b_hh0
        wih1=u(ks[4], (H, 4 * H)),
        whh1=u(ks[5], (H, 4 * H)),
        b1=u(ks[6], (1, 4 * H)) + u(ks[7], (1, 4 * H)),     # b_ih1 + b_hh1
        wfc=u(ks[8], (1, H)),
        bfc=u(ks[9], (1, OUTPUT_DIM)),
    )


def pack_params(p):
    """Pack parameters into the two kernel slabs.

      wrec : (2H, 8H)       blockdiag(whh0, whh1)
      misc : (D+H+3, 4H)    [wih0; wih1; b0; b1; head]  where
                            head = [wfc (H lanes) | bfc (1 lane) | zeros]
    """
    H, D = HIDDEN_DIM, INPUT_DIM
    wrec = jnp.zeros((2 * H, 8 * H), jnp.float32)
    wrec = wrec.at[:H, :4 * H].set(p["whh0"])
    wrec = wrec.at[H:, 4 * H:].set(p["whh1"])

    head = jnp.zeros((1, 4 * H), jnp.float32)
    head = head.at[:, :H].set(p["wfc"])
    head = head.at[:, H:H + 1].set(p["bfc"])
    misc = jnp.concatenate([p["wih0"], p["wih1"], p["b0"], p["b1"], head], axis=0)
    return wrec, misc


def reference_forward(x, p):
    """Pure-JAX reference (un-fused formulation) for a correctness check."""
    H = HIDDEN_DIM
    B, T, D = x.shape

    def cell(x_in, h, c, w_ih, w_hh, b):
        gates = (jnp.dot(x_in, w_ih, precision=lax.Precision.HIGHEST)
                 + jnp.dot(h, w_hh, precision=lax.Precision.HIGHEST) + b)
        i = jax.nn.sigmoid(gates[:, 0 * H:1 * H])
        f = jax.nn.sigmoid(gates[:, 1 * H:2 * H])
        g = jnp.tanh(gates[:, 2 * H:3 * H])
        o = jax.nn.sigmoid(gates[:, 3 * H:4 * H])
        c_new = f * c + i * g
        h_new = o * jnp.tanh(c_new)
        return h_new, c_new

    h0 = jnp.zeros((B, H), jnp.float32)
    c0 = jnp.zeros((B, H), jnp.float32)
    h1 = jnp.zeros((B, H), jnp.float32)
    c1 = jnp.zeros((B, H), jnp.float32)
    for t in range(T):
        h0, c0 = cell(x[:, t, :], h0, c0, p["wih0"], p["whh0"], p["b0"])
        h1, c1 = cell(h0, h1, c1, p["wih1"], p["whh1"], p["b1"])
    out = jnp.dot(h1, p["wfc"].T, precision=lax.Precision.HIGHEST) + p["bfc"]
    return out[:, 0]


if __name__ == "__main__":
    key = jax.random.PRNGKey(0)
    k_x, k_p = jax.random.split(key)
    x = jax.random.normal(k_x, (BATCH, SEQ, INPUT_DIM), jnp.float32)
    params = init_params(k_p)
    wrec, misc = pack_params(params)

    out = lstm_regressor_forward(x, wrec, misc)
    out = jax.block_until_ready(out)

    ref = reference_forward(x, params)
    assert out.shape == (BATCH,), out.shape
    assert jnp.allclose(out, ref, atol=1e-4, rtol=1e-4), (out, ref)

    print("KERNEL_OK")
</pallas_src>

<mosaic_0001>
module attributes {stable_mosaic.version = 11 : i64} {
  func.func @kernel(%arg0: memref<64x16xf32, #tpu.memory_space<vmem>>, %arg1: memref<64x256xf32, #tpu.memory_space<vmem>>, %arg2: memref<51x128xf32, #tpu.memory_space<vmem>>, %arg3: memref<8x1xf32, #tpu.memory_space<vmem>>) attributes {dimension_semantics = [], scalar_prefetch = 0 : i64, scratch_operands = 0 : i64, tpu.core_type = #tpu.core_type<tc>} {
    %c0 = arith.constant 0 : index
    %c0_0 = arith.constant 0 : index
    %0 = vector.load %arg2[%c0, %c0_0] : memref<51x128xf32, #tpu.memory_space<vmem>>, vector<51x128xf32>
    %1 = vector.extract_strided_slice %0 {offsets = [0, 0], sizes = [16, 128], strides = [1, 1]} : vector<51x128xf32> to vector<16x128xf32>
    %2 = vector.extract_strided_slice %0 {offsets = [16, 0], sizes = [32, 128], strides = [1, 1]} : vector<51x128xf32> to vector<32x128xf32>
    %3 = vector.extract_strided_slice %0 {offsets = [48, 0], sizes = [1, 128], strides = [1, 1]} : vector<51x128xf32> to vector<1x128xf32>
    %4 = vector.extract_strided_slice %0 {offsets = [49, 0], sizes = [1, 128], strides = [1, 1]} : vector<51x128xf32> to vector<1x128xf32>
    %5 = vector.extract_strided_slice %0 {offsets = [50, 0], sizes = [1, 128], strides = [1, 1]} : vector<51x128xf32> to vector<1x128xf32>
    %6 = vector.extract_strided_slice %5 {offsets = [0, 0], sizes = [1, 32], strides = [1, 1]} : vector<1x128xf32> to vector<1x32xf32>
    %7 = vector.extract_strided_slice %5 {offsets = [0, 32], sizes = [1, 1], strides = [1, 1]} : vector<1x128xf32> to vector<1x1xf32>
    %c0_1 = arith.constant 0 : index
    %c0_2 = arith.constant 0 : index
    %8 = vector.load %arg1[%c0_1, %c0_2] : memref<64x256xf32, #tpu.memory_space<vmem>>, vector<64x256xf32>
    %c0_3 = arith.constant 0 : index
    %c0_4 = arith.constant 0 : index
    %9 = vector.load %arg0[%c0_3, %c0_4] : memref<64x16xf32, #tpu.memory_space<vmem>>, vector<64x16xf32>
    %cst = arith.constant dense<0.000000e+00> : vector<64x128xf32>
    %10 = tpu.matmul %9, %1, %cst {dimension_numbers = #tpu.dot_dimension_numbers<[1], [0], [0], [1], [0, 0, 1, 1], [], []>} : vector<64x16xf32>, vector<16x128xf32>, vector<64x128xf32> -> vector<64x128xf32>
    %11 = vector.broadcast %3 : vector<1x128xf32> to vector<64x128xf32>
    %12 = arith.addf %10, %11 : vector<64x128xf32>
    %cst_5 = arith.constant 0.000000e+00 : f32
    %13 = vector.broadcast %cst_5 : f32 to vector<8x32xf32>
    %cst_6 = arith.constant 0.000000e+00 : f32
    %14 = vector.broadcast %cst_6 : f32 to vector<8x32xf32>
    %cst_7 = arith.constant 0.000000e+00 : f32
    %15 = vector.broadcast %cst_7 : f32 to vector<8x32xf32>
    %cst_8 = arith.constant 0.000000e+00 : f32
    %16 = vector.broadcast %cst_8 : f32 to vector<8x32xf32>
    %17 = tpu.concatenate %13, %15 in 1 : vector<8x32xf32>, vector<8x32xf32> -> vector<8x64xf32>
    %cst_9 = arith.constant dense<0.000000e+00> : vector<8x256xf32>
    %18 = tpu.matmul %17, %8, %cst_9 {dimension_numbers = #tpu.dot_dimension_numbers<[1], [0], [0], [1], [0, 0, 1, 1], [], []>} : vector<8x64xf32>, vector<64x256xf32>, vector<8x256xf32> -> vector<8x256xf32>
    %19 = vector.extract_strided_slice %12 {offsets = [0, 0], sizes = [8, 128], strides = [1, 1]} : vector<64x128xf32> to vector<8x128xf32>
    %20 = vector.extract_strided_slice %18 {offsets = [0, 0], sizes = [8, 128], strides = [1, 1]} : vector<8x256xf32> to vector<8x128xf32>
    %21 = arith.addf %19, %20 : vector<8x128xf32>
    %22 = arith.negf %21 : vector<8x128xf32>
    %23 = math.exp %22 : vector<8x128xf32>
    %cst_10 = arith.constant 1.000000e+00 : f32
    %24 = vector.broadcast %cst_10 : f32 to vector<8x128xf32>
    %25 = arith.addf %24, %23 : vector<8x128xf32>
    %26 = arith.divf %24, %25 : vector<8x128xf32>
    %27 = vector.extract_strided_slice %26 {offsets = [0, 0], sizes = [8, 32], strides = [1, 1]} : vector<8x128xf32> to vector<8x32xf32>
    %28 = vector.extract_strided_slice %26 {offsets = [0, 32], sizes = [8, 32], strides = [1, 1]} : vector<8x128xf32> to vector<8x32xf32>
    %29 = vector.extract_strided_slice %26 {offsets = [0, 96], sizes = [8, 32], strides = [1, 1]} : vector<8x128xf32> to vector<8x32xf32>
    %30 = vector.extract_strided_slice %21 {offsets = [0, 64], sizes = [8, 32], strides = [1, 1]} : vector<8x128xf32> to vector<8x32xf32>
    %31 = math.tanh %30 : vector<8x32xf32>
    %32 = arith.mulf %28, %14 : vector<8x32xf32>
    %33 = arith.mulf %27, %31 : vector<8x32xf32>
    %34 = arith.addf %32, %33 : vector<8x32xf32>
    %35 = math.tanh %34 : vector<8x32xf32>
    %36 = arith.mulf %29, %35 : vector<8x32xf32>
    %cst_11 = arith.constant dense<0.000000e+00> : vector<8x128xf32>
    %37 = tpu.matmul %36, %2, %cst_11 {dimension_numbers = #tpu.dot_dimension_numbers<[1], [0], [0], [1], [0, 0, 1, 1], [], []>} : vector<8x32xf32>, vector<32x128xf32>, vector<8x128xf32> -> vector<8x128xf32>
    %38 = vector.extract_strided_slice %18 {offsets = [0, 128], sizes = [8, 128], strides = [1, 1]} : vector<8x256xf32> to vector<8x128xf32>
    %39 = arith.addf %37, %38 : vector<8x128xf32>
    %40 = vector.broadcast %4 : vector<1x128xf32> to vector<8x128xf32>
    %41 = arith.addf %39, %40 : vector<8x128xf32>
    %42 = arith.negf %41 : vector<8x128xf32>
    %43 = math.exp %42 : vector<8x128xf32>
    %cst_12 = arith.constant 1.000000e+00 : f32
    %44 = vector.broadcast %cst_12 : f32 to vector<8x128xf32>
    %45 = arith.addf %44, %43 : vector<8x128xf32>
    %46 = arith.divf %44, %45 : vector<8x128xf32>
    %47 = vector.extract_strided_slice %46 {offsets = [0, 0], sizes = [8, 32], strides = [1, 1]} : vector<8x128xf32> to vector<8x32xf32>
    %48 = vector.extract_strided_slice %46 {offsets = [0, 32], sizes = [8, 32], strides = [1, 1]} : vector<8x128xf32> to vector<8x32xf32>
    %49 = vector.extract_strided_slice %46 {offsets = [0, 96], sizes = [8, 32], strides = [1, 1]} : vector<8x128xf32> to vector<8x32xf32>
    %50 = vector.extract_strided_slice %41 {offsets = [0, 64], sizes = [8, 32], strides = [1, 1]} : vector<8x128xf32> to vector<8x32xf32>
    %51 = math.tanh %50 : vector<8x32xf32>
    %52 = arith.mulf %48, %16 : vector<8x32xf32>
    %53 = arith.mulf %47, %51 : vector<8x32xf32>
    %54 = arith.addf %52, %53 : vector<8x32xf32>
    %55 = math.tanh %54 : vector<8x32xf32>
    %56 = arith.mulf %49, %55 : vector<8x32xf32>
    %57 = tpu.concatenate %36, %56 in 1 : vector<8x32xf32>, vector<8x32xf32> -> vector<8x64xf32>
    %cst_13 = arith.constant dense<0.000000e+00> : vector<8x256xf32>
    %58 = tpu.matmul %57, %8, %cst_13 {dimension_numbers = #tpu.dot_dimension_numbers<[1], [0], [0], [1], [0, 0, 1, 1], [], []>} : vector<8x64xf32>, vector<64x256xf32>, vector<8x256xf32> -> vector<8x256xf32>
    %59 = vector.extract_strided_slice %12 {offsets = [8, 0], sizes = [8, 128], strides = [1, 1]} : vector<64x128xf32> to vector<8x128xf32>
    %60 = vector.extract_strided_slice %58 {offsets = [0, 0], sizes = [8, 128], strides = [1, 1]} : vector<8x256xf32> to vector<8x128xf32>
    %61 = arith.addf %59, %60 : vector<8x128xf32>
    %62 = arith.negf %61 : vector<8x128xf32>
    %63 = math.exp %62 : vector<8x128xf32>
    %cst_14 = arith.constant 1.000000e+00 : f32
    %64 = vector.broadcast %cst_14 : f32 to vector<8x128xf32>
    %65 = arith.addf %64, %63 : vector<8x128xf32>
    %66 = arith.divf %64, %65 : vector<8x128xf32>
    %67 = vector.extract_strided_slice %66 {offsets = [0, 0], sizes = [8, 32], strides = [1, 1]} : vector<8x128xf32> to vector<8x32xf32>
    %68 = vector.extract_strided_slice %66 {offsets = [0, 32], sizes = [8, 32], strides = [1, 1]} : vector<8x128xf32> to vector<8x32xf32>
    %69 = vector.extract_strided_slice %66 {offsets = [0, 96], sizes = [8, 32], strides = [1, 1]} : vector<8x128xf32> to vector<8x32xf32>
    %70 = vector.extract_strided_slice %61 {offsets = [0, 64], sizes = [8, 32], strides = [1, 1]} : vector<8x128xf32> to vector<8x32xf32>
    %71 = math.tanh %70 : vector<8x32xf32>
    %72 = arith.mulf %68, %34 : vector<8x32xf32>
    %73 = arith.mulf %67, %71 : vector<8x32xf32>
    %74 = arith.addf %72, %73 : vector<8x32xf32>
    %75 = math.tanh %74 : vector<8x32xf32>
    %76 = arith.mulf %69, %75 : vector<8x32xf32>
    %cst_15 = arith.constant dense<0.000000e+00> : vector<8x128xf32>
    %77 = tpu.matmul %76, %2, %cst_15 {dimension_numbers = #tpu.dot_dimension_numbers<[1], [0], [0], [1], [0, 0, 1, 1], [], []>} : vector<8x32xf32>, vector<32x128xf32>, vector<8x128xf32> -> vector<8x128xf32>
    %78 = vector.extract_strided_slice %58 {offsets = [0, 128], sizes = [8, 128], strides = [1, 1]} : vector<8x256xf32> to vector<8x128xf32>
    %79 = arith.addf %77, %78 : vector<8x128xf32>
    %80 = vector.broadcast %4 : vector<1x128xf32> to vector<8x128xf32>
    %81 = arith.addf %79, %80 : vector<8x128xf32>
    %82 = arith.negf %81 : vector<8x128xf32>
    %83 = math.exp %82 : vector<8x128xf32>
    %cst_16 = arith.constant 1.000000e+00 : f32
    %84 = vector.broadcast %cst_16 : f32 to vector<8x128xf32>
    %85 = arith.addf %84, %83 : vector<8x128xf32>
    %86 = arith.divf %84, %85 : vector<8x128xf32>
    %87 = vector.extract_strided_slice %86 {offsets = [0, 0], sizes = [8, 32], strides = [1, 1]} : vector<8x128xf32> to vector<8x32xf32>
    %88 = vector.extract_strided_slice %86 {offsets = [0, 32], sizes = [8, 32], strides = [1, 1]} : vector<8x128xf32> to vector<8x32xf32>
    %89 = vector.extract_strided_slice %86 {offsets = [0, 96], sizes = [8, 32], strides = [1, 1]} : vector<8x128xf32> to vector<8x32xf32>
    %90 = vector.extract_strided_slice %81 {offsets = [0, 64], sizes = [8, 32], strides = [1, 1]} : vector<8x128xf32> to vector<8x32xf32>
    %91 = math.tanh %90 : vector<8x32xf32>
    %92 = arith.mulf %88, %54 : vector<8x32xf32>
    %93 = arith.mulf %87, %91 : vector<8x32xf32>
    %94 = arith.addf %92, %93 : vector<8x32xf32>
    %95 = math.tanh %94 : vector<8x32xf32>
    %96 = arith.mulf %89, %95 : vector<8x32xf32>
    %97 = tpu.concatenate %76, %96 in 1 : vector<8x32xf32>, vector<8x32xf32> -> vector<8x64xf32>
    %cst_17 = arith.constant dense<0.000000e+00> : vector<8x256xf32>
    %98 = tpu.matmul %97, %8, %cst_17 {dimension_numbers = #tpu.dot_dimension_numbers<[1], [0], [0], [1], [0, 0, 1, 1], [], []>} : vector<8x64xf32>, vector<64x256xf32>, vector<8x256xf32> -> vector<8x256xf32>
    %99 = vector.extract_strided_slice %12 {offsets = [16, 0], sizes = [8, 128], strides = [1, 1]} : vector<64x128xf32> to vector<8x128xf32>
    %100 = vector.extract_strided_slice %98 {offsets = [0, 0], sizes = [8, 128], strides = [1, 1]} : vector<8x256xf32> to vector<8x128xf32>
    %101 = arith.addf %99, %100 : vector<8x128xf32>
    %102 = arith.negf %101 : vector<8x128xf32>
    %103 = math.exp %102 : vector<8x128xf32>
    %cst_18 = arith.constant 1.000000e+00 : f32
    %104 = vector.broadcast %cst_18 : f32 to vector<8x128xf32>
    %105 = arith.addf %104, %103 : vector<8x128xf32>
    %106 = arith.divf %104, %105 : vector<8x128xf32>
    %107 = vector.extract_strided_slice %106 {offsets = [0, 0], sizes = [8, 32], strides = [1, 1]} : vector<8x128xf32> to vector<8x32xf32>
    %108 = vector.extract_strided_slice %106 {offsets = [0, 32], sizes = [8, 32], strides = [1, 1]} : vector<8x128xf32> to vector<8x32xf32>
    %109 = vector.extract_strided_slice %106 {offsets = [0, 96], sizes = [8, 32], strides = [1, 1]} : vector<8x128xf32> to vector<8x32xf32>
    %110 = vector.extract_strided_slice %101 {offsets = [0, 64], sizes = [8, 32], strides = [1, 1]} : vector<8x128xf32> to vector<8x32xf32>
    %111 = math.tanh %110 : vector<8x32xf32>
    %112 = arith.mulf %108, %74 : vector<8x32xf32>
    %113 = arith.mulf %107, %111 : vector<8x32xf32>
    %114 = arith.addf %112, %113 : vector<8x32xf32>
    %115 = math.tanh %114 : vector<8x32xf32>
    %116 = arith.mulf %109, %115 : vector<8x32xf32>
    %cst_19 = arith.constant dense<0.000000e+00> : vector<8x128xf32>
    %117 = tpu.matmul %116, %2, %cst_19 {dimension_numbers = #tpu.dot_dimension_numbers<[1], [0], [0], [1], [0, 0, 1, 1], [], []>} : vector<8x32xf32>, vector<32x128xf32>, vector<8x128xf32> -> vector<8x128xf32>
    %118 = vector.extract_strided_slice %98 {offsets = [0, 128], sizes = [8, 128], strides = [1, 1]} : vector<8x256xf32> to vector<8x128xf32>
    %119 = arith.addf %117, %118 : vector<8x128xf32>
    %120 = vector.broadcast %4 : vector<1x128xf32> to vector<8x128xf32>
    %121 = arith.addf %119, %120 : vector<8x128xf32>
    %122 = arith.negf %121 : vector<8x128xf32>
    %123 = math.exp %122 : vector<8x128xf32>
    %cst_20 = arith.constant 1.000000e+00 : f32
    %124 = vector.broadcast %cst_20 : f32 to vector<8x128xf32>
    %125 = arith.addf %124, %123 : vector<8x128xf32>
    %126 = arith.divf %124, %125 : vector<8x128xf32>
    %127 = vector.extract_strided_slice %126 {offsets = [0, 0], sizes = [8, 32], strides = [1, 1]} : vector<8x128xf32> to vector<8x32xf32>
    %128 = vector.extract_strided_slice %126 {offsets = [0, 32], sizes = [8, 32], strides = [1, 1]} : vector<8x128xf32> to vector<8x32xf32>
    %129 = vector.extract_strided_slice %126 {offsets = [0, 96], sizes = [8, 32], strides = [1, 1]} : vector<8x128xf32> to vector<8x32xf32>
    %130 = vector.extract_strided_slice %121 {offsets = [0, 64], sizes = [8, 32], strides = [1, 1]} : vector<8x128xf32> to vector<8x32xf32>
    %131 = math.tanh %130 : vector<8x32xf32>
    %132 = arith.mulf %128, %94 : vector<8x32xf32>
    %133 = arith.mulf %127, %131 : vector<8x32xf32>
    %134 = arith.addf %132, %133 : vector<8x32xf32>
    %135 = math.tanh %134 : vector<8x32xf32>
    %136 = arith.mulf %129, %135 : vector<8x32xf32>
    %137 = tpu.concatenate %116, %136 in 1 : vector<8x32xf32>, vector<8x32xf32> -> vector<8x64xf32>
    %cst_21 = arith.constant dense<0.000000e+00> : vector<8x256xf32>
    %138 = tpu.matmul %137, %8, %cst_21 {dimension_numbers = #tpu.dot_dimension_numbers<[1], [0], [0], [1], [0, 0, 1, 1], [], []>} : vector<8x64xf32>, vector<64x256xf32>, vector<8x256xf32> -> vector<8x256xf32>
    %139 = vector.extract_strided_slice %12 {offsets = [24, 0], sizes = [8, 128], strides = [1, 1]} : vector<64x128xf32> to vector<8x128xf32>
    %140 = vector.extract_strided_slice %138 {offsets = [0, 0], sizes = [8, 128], strides = [1, 1]} : vector<8x256xf32> to vector<8x128xf32>
    %141 = arith.addf %139, %140 : vector<8x128xf32>
    %142 = arith.negf %141 : vector<8x128xf32>
    %143 = math.exp %142 : vector<8x128xf32>
    %cst_22 = arith.constant 1.000000e+00 : f32
    %144 = vector.broadcast %cst_22 : f32 to vector<8x128xf32>
    %145 = arith.addf %144, %143 : vector<8x128xf32>
    %146 = arith.divf %144, %145 : vector<8x128xf32>
    %147 = vector.extract_strided_slice %146 {offsets = [0, 0], sizes = [8, 32], strides = [1, 1]} : vector<8x128xf32> to vector<8x32xf32>
    %148 = vector.extract_strided_slice %146 {offsets = [0, 32], sizes = [8, 32], strides = [1, 1]} : vector<8x128xf32> to vector<8x32xf32>
    %149 = vector.extract_strided_slice %146 {offsets = [0, 96], sizes = [8, 32], strides = [1, 1]} : vector<8x128xf32> to vector<8x32xf32>
    %150 = vector.extract_strided_slice %141 {offsets = [0, 64], sizes = [8, 32], strides = [1, 1]} : vector<8x128xf32> to vector<8x32xf32>
    %151 = math.tanh %150 : vector<8x32xf32>
    %152 = arith.mulf %148, %114 : vector<8x32xf32>
    %153 = arith.mulf %147, %151 : vector<8x32xf32>
    %154 = arith.addf %152, %153 : vector<8x32xf32>
    %155 = math.tanh %154 : vector<8x32xf32>
    %156 = arith.mulf %149, %155 : vector<8x32xf32>
    %cst_23 = arith.constant dense<0.000000e+00> : vector<8x128xf32>
    %157 = tpu.matmul %156, %2, %cst_23 {dimension_numbers = #tpu.dot_dimension_numbers<[1], [0], [0], [1], [0, 0, 1, 1], [], []>} : vector<8x32xf32>, vector<32x128xf32>, vector<8x128xf32> -> vector<8x128xf32>
    %158 = vector.extract_strided_slice %138 {offsets = [0, 128], sizes = [8, 128], strides = [1, 1]} : vector<8x256xf32> to vector<8x128xf32>
    %159 = arith.addf %157, %158 : vector<8x128xf32>
    %160 = vector.broadcast %4 : vector<1x128xf32> to vector<8x128xf32>
    %161 = arith.addf %159, %160 : vector<8x128xf32>
    %162 = arith.negf %161 : vector<8x128xf32>
    %163 = math.exp %162 : vector<8x128xf32>
    %cst_24 = arith.constant 1.000000e+00 : f32
    %164 = vector.broadcast %cst_24 : f32 to vector<8x128xf32>
    %165 = arith.addf %164, %163 : vector<8x128xf32>
    %166 = arith.divf %164, %165 : vector<8x128xf32>
    %167 = vector.extract_strided_slice %166 {offsets = [0, 0], sizes = [8, 32], strides = [1, 1]} : vector<8x128xf32> to vector<8x32xf32>
    %168 = vector.extract_strided_slice %166 {offsets = [0, 32], sizes = [8, 32], strides = [1, 1]} : vector<8x128xf32> to vector<8x32xf32>
    %169 = vector.extract_strided_slice %166 {offsets = [0, 96], sizes = [8, 32], strides = [1, 1]} : vector<8x128xf32> to vector<8x32xf32>
    %170 = vector.extract_strided_slice %161 {offsets = [0, 64], sizes = [8, 32], strides = [1, 1]} : vector<8x128xf32> to vector<8x32xf32>
    %171 = math.tanh %170 : vector<8x32xf32>
    %172 = arith.mulf %168, %134 : vector<8x32xf32>
    %173 = arith.mulf %167, %171 : vector<8x32xf32>
    %174 = arith.addf %172, %173 : vector<8x32xf32>
    %175 = math.tanh %174 : vector<8x32xf32>
    %176 = arith.mulf %169, %175 : vector<8x32xf32>
    %177 = tpu.concatenate %156, %176 in 1 : vector<8x32xf32>, vector<8x32xf32> -> vector<8x64xf32>
    %cst_25 = arith.constant dense<0.000000e+00> : vector<8x256xf32>
    %178 = tpu.matmul %177, %8, %cst_25 {dimension_numbers = #tpu.dot_dimension_numbers<[1], [0], [0], [1], [0, 0, 1, 1], [], []>} : vector<8x64xf32>, vector<64x256xf32>, vector<8x256xf32> -> vector<8x256xf32>
    %179 = vector.extract_strided_slice %12 {offsets = [32, 0], sizes = [8, 128], strides = [1, 1]} : vector<64x128xf32> to vector<8x128xf32>
    %180 = vector.extract_strided_slice %178 {offsets = [0, 0], sizes = [8, 128], strides = [1, 1]} : vector<8x256xf32> to vector<8x128xf32>
    %181 = arith.addf %179, %180 : vector<8x128xf32>
    %182 = arith.negf %181 : vector<8x128xf32>
    %183 = math.exp %182 : vector<8x128xf32>
    %cst_26 = arith.constant 1.000000e+00 : f32
    %184 = vector.broadcast %cst_26 : f32 to vector<8x128xf32>
    %185 = arith.addf %184, %183 : vector<8x128xf32>
    %186 = arith.divf %184, %185 : vector<8x128xf32>
    %187 = vector.extract_strided_slice %186 {offsets = [0, 0], sizes = [8, 32], strides = [1, 1]} : vector<8x128xf32> to vector<8x32xf32>
    %188 = vector.extract_strided_slice %186 {offsets = [0, 32], sizes = [8, 32], strides = [1, 1]} : vector<8x128xf32> to vector<8x32xf32>
    %189 = vector.extract_strided_slice %186 {offsets = [0, 96], sizes = [8, 32], strides = [1, 1]} : vector<8x128xf32> to vector<8x32xf32>
    %190 = vector.extract_strided_slice %181 {offsets = [0, 64], sizes = [8, 32], strides = [1, 1]} : vector<8x128xf32> to vector<8x32xf32>
    %191 = math.tanh %190 : vector<8x32xf32>
    %192 = arith.mulf %188, %154 : vector<8x32xf32>
    %193 = arith.mulf %187, %191 : vector<8x32xf32>
    %194 = arith.addf %192, %193 : vector<8x32xf32>
    %195 = math.tanh %194 : vector<8x32xf32>
    %196 = arith.mulf %189, %195 : vector<8x32xf32>
    %cst_27 = arith.constant dense<0.000000e+00> : vector<8x128xf32>
    %197 = tpu.matmul %196, %2, %cst_27 {dimension_numbers = #tpu.dot_dimension_numbers<[1], [0], [0], [1], [0, 0, 1, 1], [], []>} : vector<8x32xf32>, vector<32x128xf32>, vector<8x128xf32> -> vector<8x128xf32>
    %198 = vector.extract_strided_slice %178 {offsets = [0, 128], sizes = [8, 128], strides = [1, 1]} : vector<8x256xf32> to vector<8x128xf32>
    %199 = arith.addf %197, %198 : vector<8x128xf32>
    %200 = vector.broadcast %4 : vector<1x128xf32> to vector<8x128xf32>
    %201 = arith.addf %199, %200 : vector<8x128xf32>
    %202 = arith.negf %201 : vector<8x128xf32>
    %203 = math.exp %202 : vector<8x128xf32>
    %cst_28 = arith.constant 1.000000e+00 : f32
    %204 = vector.broadcast %cst_28 : f32 to vector<8x128xf32>
    %205 = arith.addf %204, %203 : vector<8x128xf32>
    %206 = arith.divf %204, %205 : vector<8x128xf32>
    %207 = vector.extract_strided_slice %206 {offsets = [0, 0], sizes = [8, 32], strides = [1, 1]} : vector<8x128xf32> to vector<8x32xf32>
    %208 = vector.extract_strided_slice %206 {offsets = [0, 32], sizes = [8, 32], strides = [1, 1]} : vector<8x128xf32> to vector<8x32xf32>
    %209 = vector.extract_strided_slice %206 {offsets = [0, 96], sizes = [8, 32], strides = [1, 1]} : vector<8x128xf32> to vector<8x32xf32>
    %210 = vector.extract_strided_slice %201 {offsets = [0, 64], sizes = [8, 32], strides = [1, 1]} : vector<8x128xf32> to vector<8x32xf32>
    %211 = math.tanh %210 : vector<8x32xf32>
    %212 = arith.mulf %208, %174 : vector<8x32xf32>
    %213 = arith.mulf %207, %211 : vector<8x32xf32>
    %214 = arith.addf %212, %213 : vector<8x32xf32>
    %215 = math.tanh %214 : vector<8x32xf32>
    %216 = arith.mulf %209, %215 : vector<8x32xf32>
    %217 = tpu.concatenate %196, %216 in 1 : vector<8x32xf32>, vector<8x32xf32> -> vector<8x64xf32>
    %cst_29 = arith.constant dense<0.000000e+00> : vector<8x256xf32>
    %218 = tpu.matmul %217, %8, %cst_29 {dimension_numbers = #tpu.dot_dimension_numbers<[1], [0], [0], [1], [0, 0, 1, 1], [], []>} : vector<8x64xf32>, vector<64x256xf32>, vector<8x256xf32> -> vector<8x256xf32>
    %219 = vector.extract_strided_slice %12 {offsets = [40, 0], sizes = [8, 128], strides = [1, 1]} : vector<64x128xf32> to vector<8x128xf32>
    %220 = vector.extract_strided_slice %218 {offsets = [0, 0], sizes = [8, 128], strides = [1, 1]} : vector<8x256xf32> to vector<8x128xf32>
    %221 = arith.addf %219, %220 : vector<8x128xf32>
    %222 = arith.negf %221 : vector<8x128xf32>
    %223 = math.exp %222 : vector<8x128xf32>
    %cst_30 = arith.constant 1.000000e+00 : f32
    %224 = vector.broadcast %cst_30 : f32 to vector<8x128xf32>
    %225 = arith.addf %224, %223 : vector<8x128xf32>
    %226 = arith.divf %224, %225 : vector<8x128xf32>
    %227 = vector.extract_strided_slice %226 {offsets = [0, 0], sizes = [8, 32], strides = [1, 1]} : vector<8x128xf32> to vector<8x32xf32>
    %228 = vector.extract_strided_slice %226 {offsets = [0, 32], sizes = [8, 32], strides = [1, 1]} : vector<8x128xf32> to vector<8x32xf32>
    %229 = vector.extract_strided_slice %226 {offsets = [0, 96], sizes = [8, 32], strides = [1, 1]} : vector<8x128xf32> to vector<8x32xf32>
    %230 = vector.extract_strided_slice %221 {offsets = [0, 64], sizes = [8, 32], strides = [1, 1]} : vector<8x128xf32> to vector<8x32xf32>
    %231 = math.tanh %230 : vector<8x32xf32>
    %232 = arith.mulf %228, %194 : vector<8x32xf32>
    %233 = arith.mulf %227, %231 : vector<8x32xf32>
    %234 = arith.addf %232, %233 : vector<8x32xf32>
    %235 = math.tanh %234 : vector<8x32xf32>
    %236 = arith.mulf %229, %235 : vector<8x32xf32>
    %cst_31 = arith.constant dense<0.000000e+00> : vector<8x128xf32>
    %237 = tpu.matmul %236, %2, %cst_31 {dimension_numbers = #tpu.dot_dimension_numbers<[1], [0], [0], [1], [0, 0, 1, 1], [], []>} : vector<8x32xf32>, vector<32x128xf32>, vector<8x128xf32> -> vector<8x128xf32>
    %238 = vector.extract_strided_slice %218 {offsets = [0, 128], sizes = [8, 128], strides = [1, 1]} : vector<8x256xf32> to vector<8x128xf32>
    %239 = arith.addf %237, %238 : vector<8x128xf32>
    %240 = vector.broadcast %4 : vector<1x128xf32> to vector<8x128xf32>
    %241 = arith.addf %239, %240 : vector<8x128xf32>
    %242 = arith.negf %241 : vector<8x128xf32>
    %243 = math.exp %242 : vector<8x128xf32>
    %cst_32 = arith.constant 1.000000e+00 : f32
    %244 = vector.broadcast %cst_32 : f32 to vector<8x128xf32>
    %245 = arith.addf %244, %243 : vector<8x128xf32>
    %246 = arith.divf %244, %245 : vector<8x128xf32>
    %247 = vector.extract_strided_slice %246 {offsets = [0, 0], sizes = [8, 32], strides = [1, 1]} : vector<8x128xf32> to vector<8x32xf32>
    %248 = vector.extract_strided_slice %246 {offsets = [0, 32], sizes = [8, 32], strides = [1, 1]} : vector<8x128xf32> to vector<8x32xf32>
    %249 = vector.extract_strided_slice %246 {offsets = [0, 96], sizes = [8, 32], strides = [1, 1]} : vector<8x128xf32> to vector<8x32xf32>
    %250 = vector.extract_strided_slice %241 {offsets = [0, 64], sizes = [8, 32], strides = [1, 1]} : vector<8x128xf32> to vector<8x32xf32>
    %251 = math.tanh %250 : vector<8x32xf32>
    %252 = arith.mulf %248, %214 : vector<8x32xf32>
    %253 = arith.mulf %247, %251 : vector<8x32xf32>
    %254 = arith.addf %252, %253 : vector<8x32xf32>
    %255 = math.tanh %254 : vector<8x32xf32>
    %256 = arith.mulf %249, %255 : vector<8x32xf32>
    %257 = tpu.concatenate %236, %256 in 1 : vector<8x32xf32>, vector<8x32xf32> -> vector<8x64xf32>
    %cst_33 = arith.constant dense<0.000000e+00> : vector<8x256xf32>
    %258 = tpu.matmul %257, %8, %cst_33 {dimension_numbers = #tpu.dot_dimension_numbers<[1], [0], [0], [1], [0, 0, 1, 1], [], []>} : vector<8x64xf32>, vector<64x256xf32>, vector<8x256xf32> -> vector<8x256xf32>
    %259 = vector.extract_strided_slice %12 {offsets = [48, 0], sizes = [8, 128], strides = [1, 1]} : vector<64x128xf32> to vector<8x128xf32>
    %260 = vector.extract_strided_slice %258 {offsets = [0, 0], sizes = [8, 128], strides = [1, 1]} : vector<8x256xf32> to vector<8x128xf32>
    %261 = arith.addf %259, %260 : vector<8x128xf32>
    %262 = arith.negf %261 : vector<8x128xf32>
    %263 = math.exp %262 : vector<8x128xf32>
    %cst_34 = arith.constant 1.000000e+00 : f32
    %264 = vector.broadcast %cst_34 : f32 to vector<8x128xf32>
    %265 = arith.addf %264, %263 : vector<8x128xf32>
    %266 = arith.divf %264, %265 : vector<8x128xf32>
    %267 = vector.extract_strided_slice %266 {offsets = [0, 0], sizes = [8, 32], strides = [1, 1]} : vector<8x128xf32> to vector<8x32xf32>
    %268 = vector.extract_strided_slice %266 {offsets = [0, 32], sizes = [8, 32], strides = [1, 1]} : vector<8x128xf32> to vector<8x32xf32>
    %269 = vector.extract_strided_slice %266 {offsets = [0, 96], sizes = [8, 32], strides = [1, 1]} : vector<8x128xf32> to vector<8x32xf32>
    %270 = vector.extract_strided_slice %261 {offsets = [0, 64], sizes = [8, 32], strides = [1, 1]} : vector<8x128xf32> to vector<8x32xf32>
    %271 = math.tanh %270 : vector<8x32xf32>
    %272 = arith.mulf %268, %234 : vector<8x32xf32>
    %273 = arith.mulf %267, %271 : vector<8x32xf32>
    %274 = arith.addf %272, %273 : vector<8x32xf32>
    %275 = math.tanh %274 : vector<8x32xf32>
    %276 = arith.mulf %269, %275 : vector<8x32xf32>
    %cst_35 = arith.constant dense<0.000000e+00> : vector<8x128xf32>
    %277 = tpu.matmul %276, %2, %cst_35 {dimension_numbers = #tpu.dot_dimension_numbers<[1], [0], [0], [1], [0, 0, 1, 1], [], []>} : vector<8x32xf32>, vector<32x128xf32>, vector<8x128xf32> -> vector<8x128xf32>
    %278 = vector.extract_strided_slice %258 {offsets = [0, 128], sizes = [8, 128], strides = [1, 1]} : vector<8x256xf32> to vector<8x128xf32>
    %279 = arith.addf %277, %278 : vector<8x128xf32>
    %280 = vector.broadcast %4 : vector<1x128xf32> to vector<8x128xf32>
    %281 = arith.addf %279, %280 : vector<8x128xf32>
    %282 = arith.negf %281 : vector<8x128xf32>
    %283 = math.exp %282 : vector<8x128xf32>
    %cst_36 = arith.constant 1.000000e+00 : f32
    %284 = vector.broadcast %cst_36 : f32 to vector<8x128xf32>
    %285 = arith.addf %284, %283 : vector<8x128xf32>
    %286 = arith.divf %284, %285 : vector<8x128xf32>
    %287 = vector.extract_strided_slice %286 {offsets = [0, 0], sizes = [8, 32], strides = [1, 1]} : vector<8x128xf32> to vector<8x32xf32>
    %288 = vector.extract_strided_slice %286 {offsets = [0, 32], sizes = [8, 32], strides = [1, 1]} : vector<8x128xf32> to vector<8x32xf32>
    %289 = vector.extract_strided_slice %286 {offsets = [0, 96], sizes = [8, 32], strides = [1, 1]} : vector<8x128xf32> to vector<8x32xf32>
    %290 = vector.extract_strided_slice %281 {offsets = [0, 64], sizes = [8, 32], strides = [1, 1]} : vector<8x128xf32> to vector<8x32xf32>
    %291 = math.tanh %290 : vector<8x32xf32>
    %292 = arith.mulf %288, %254 : vector<8x32xf32>
    %293 = arith.mulf %287, %291 : vector<8x32xf32>
    %294 = arith.addf %292, %293 : vector<8x32xf32>
    %295 = math.tanh %294 : vector<8x32xf32>
    %296 = arith.mulf %289, %295 : vector<8x32xf32>
    %297 = tpu.concatenate %276, %296 in 1 : vector<8x32xf32>, vector<8x32xf32> -> vector<8x64xf32>
    %cst_37 = arith.constant dense<0.000000e+00> : vector<8x256xf32>
    %298 = tpu.matmul %297, %8, %cst_37 {dimension_numbers = #tpu.dot_dimension_numbers<[1], [0], [0], [1], [0, 0, 1, 1], [], []>} : vector<8x64xf32>, vector<64x256xf32>, vector<8x256xf32> -> vector<8x256xf32>
    %299 = vector.extract_strided_slice %12 {offsets = [56, 0], sizes = [8, 128], strides = [1, 1]} : vector<64x128xf32> to vector<8x128xf32>
    %300 = vector.extract_strided_slice %298 {offsets = [0, 0], sizes = [8, 128], strides = [1, 1]} : vector<8x256xf32> to vector<8x128xf32>
    %301 = arith.addf %299, %300 : vector<8x128xf32>
    %302 = arith.negf %301 : vector<8x128xf32>
    %303 = math.exp %302 : vector<8x128xf32>
    %cst_38 = arith.constant 1.000000e+00 : f32
    %304 = vector.broadcast %cst_38 : f32 to vector<8x128xf32>
    %305 = arith.addf %304, %303 : vector<8x128xf32>
    %306 = arith.divf %304, %305 : vector<8x128xf32>
    %307 = vector.extract_strided_slice %306 {offsets = [0, 0], sizes = [8, 32], strides = [1, 1]} : vector<8x128xf32> to vector<8x32xf32>
    %308 = vector.extract_strided_slice %306 {offsets = [0, 32], sizes = [8, 32], strides = [1, 1]} : vector<8x128xf32> to vector<8x32xf32>
    %309 = vector.extract_strided_slice %306 {offsets = [0, 96], sizes = [8, 32], strides = [1, 1]} : vector<8x128xf32> to vector<8x32xf32>
    %310 = vector.extract_strided_slice %301 {offsets = [0, 64], sizes = [8, 32], strides = [1, 1]} : vector<8x128xf32> to vector<8x32xf32>
    %311 = math.tanh %310 : vector<8x32xf32>
    %312 = arith.mulf %308, %274 : vector<8x32xf32>
    %313 = arith.mulf %307, %311 : vector<8x32xf32>
    %314 = arith.addf %312, %313 : vector<8x32xf32>
    %315 = math.tanh %314 : vector<8x32xf32>
    %316 = arith.mulf %309, %315 : vector<8x32xf32>
    %cst_39 = arith.constant dense<0.000000e+00> : vector<8x128xf32>
    %317 = tpu.matmul %316, %2, %cst_39 {dimension_numbers = #tpu.dot_dimension_numbers<[1], [0], [0], [1], [0, 0, 1, 1], [], []>} : vector<8x32xf32>, vector<32x128xf32>, vector<8x128xf32> -> vector<8x128xf32>
    %318 = vector.extract_strided_slice %298 {offsets = [0, 128], sizes = [8, 128], strides = [1, 1]} : vector<8x256xf32> to vector<8x128xf32>
    %319 = arith.addf %317, %318 : vector<8x128xf32>
    %320 = vector.broadcast %4 : vector<1x128xf32> to vector<8x128xf32>
    %321 = arith.addf %319, %320 : vector<8x128xf32>
    %322 = arith.negf %321 : vector<8x128xf32>
    %323 = math.exp %322 : vector<8x128xf32>
    %cst_40 = arith.constant 1.000000e+00 : f32
    %324 = vector.broadcast %cst_40 : f32 to vector<8x128xf32>
    %325 = arith.addf %324, %323 : vector<8x128xf32>
    %326 = arith.divf %324, %325 : vector<8x128xf32>
    %327 = vector.extract_strided_slice %326 {offsets = [0, 0], sizes = [8, 32], strides = [1, 1]} : vector<8x128xf32> to vector<8x32xf32>
    %328 = vector.extract_strided_slice %326 {offsets = [0, 32], sizes = [8, 32], strides = [1, 1]} : vector<8x128xf32> to vector<8x32xf32>
    %329 = vector.extract_strided_slice %326 {offsets = [0, 96], sizes = [8, 32], strides = [1, 1]} : vector<8x128xf32> to vector<8x32xf32>
    %330 = vector.extract_strided_slice %321 {offsets = [0, 64], sizes = [8, 32], strides = [1, 1]} : vector<8x128xf32> to vector<8x32xf32>
    %331 = math.tanh %330 : vector<8x32xf32>
    %332 = arith.mulf %328, %294 : vector<8x32xf32>
    %333 = arith.mulf %327, %331 : vector<8x32xf32>
    %334 = arith.addf %332, %333 : vector<8x32xf32>
    %335 = math.tanh %334 : vector<8x32xf32>
    %336 = arith.mulf %329, %335 : vector<8x32xf32>
    %337 = vector.broadcast %6 : vector<1x32xf32> to vector<8x32xf32>
    %338 = arith.mulf %336, %337 : vector<8x32xf32>
    %cst_41 = arith.constant dense<0.000000e+00> : vector<8xf32>
    %339 = vector.multi_reduction <add>, %338, %cst_41 [1] : vector<8x32xf32> to vector<8xf32>
    %340 = vector.shape_cast %339 : vector<8xf32> to vector<8x1xf32>
    %341 = vector.broadcast %7 : vector<1x1xf32> to vector<8x1xf32>
    %342 = arith.addf %340, %341 : vector<8x1xf32>
    %c0_42 = arith.constant 0 : index
    %c0_43 = arith.constant 0 : index
    %343 = vector.load %arg3[%c0_42, %c0_43] : memref<8x1xf32, #tpu.memory_space<vmem>>, vector<8x1xf32>
    tpu.vector_store %arg3[%c0_42, %c0_43], %342 {strides = array<i32>} : memref<8x1xf32, #tpu.memory_space<vmem>>, vector<8x1xf32>,
    return
  }
}

</mosaic_0001>

<llo_original>
// kernel: lstm_regressor_forward.1
$region0: #{lstm_regressor_forward.1}
  #allocation0 [shape = 'u32[]', space=smem, size = 0x4, offset = 0x4, fixed_abs, tag = 'smem constant byte address 0x4 - core index']
  #allocation1 [shape = 'u32[144,128]{1,0:T(1,128)}', space=vmem, size = 0x12000, scoped, tag = 'internal scratch']
  %s0 = inlined_call_operand.vmem [shape: f32[64,16], index: 0, kind: input, shape index: {}]
  %s1 = inlined_call_operand.vmem [shape: f32[64,256], index: 1, kind: input, shape index: {}]
  %s2 = inlined_call_operand.vmem [shape: f32[51,128], index: 2, kind: input, shape index: {}]
  %s3 = inlined_call_operand.vmem [shape: f32[8,1], index: 3, kind: output, shape index: {}]
  %s4 = sld [smem:[#allocation0]]
  $region22: #{lstm_regressor_forward.1} parent=0
    _
  %s6 = ssub.s32 1, %s4
  %s7 = scalar_select 0, %s6, %s4
  // Predicated region
  $region2: #{lstm_regressor_forward.1} parent=0 // pred_check
    _
  $region3: #{lstm_regressor_forward.1} parent=0 // pred_check_branch
    %9 = sbr.rel (0) target = $region5
  $region4: #{lstm_regressor_forward.1} parent=0 // pred_region
    _
  $region5: #{lstm_regressor_forward.1} parent=0 // pred_fallthru
    _
  // Predicated region
  $region6: #{lstm_regressor_forward.1} parent=0 // pred_check
    _
  $region7: #{lstm_regressor_forward.1} parent=0 // pred_check_branch
    %11 = sbr.rel (0) target = $region9
  $region8: #{lstm_regressor_forward.1} parent=0 // pred_region
    _
  $region9: #{lstm_regressor_forward.1} parent=0 // pred_fallthru
    _
  // Predicated region
  $region10: #{lstm_regressor_forward.1} parent=0 // pred_check
    _
  $region11: #{lstm_regressor_forward.1} parent=0 // pred_check_branch
    %13 = sbr.rel (0) target = $region13
  $region12: #{lstm_regressor_forward.1} parent=0 // pred_region
    _
  $region13: #{lstm_regressor_forward.1} parent=0 // pred_fallthru
    _
  %v14 = vld [vmem:[%s2] sm:$0xff]
  %v15 = vld [vmem:[%s2 + $0x8] sm:$0xff]
  %v16 = vld [vmem:[%s2 + $0x10] sm:$0xff]
  %v17 = vld [vmem:[%s2 + $0x18] sm:$0xff]
  %v18 = vld [vmem:[%s2 + $0x20] sm:$0xff]
  %v19 = vld [vmem:[%s2 + $0x28] sm:$0xff]
  %v20 = vld [vmem:[%s2 + $0x30] sm:$0x7]
  %v21 = vld [vmem:[%s1] sm:$0xff]
  %v22 = vld [vmem:[%s1 + $0x8] sm:$0xff]
  %v23 = vld [vmem:[%s1 + $0x10] sm:$0xff]
  %v24 = vld [vmem:[%s1 + $0x18] sm:$0xff]
  %v25 = vld [vmem:[%s1 + $0x20] sm:$0xff]
  %v26 = vld [vmem:[%s1 + $0x28] sm:$0xff]
  %v27 = vld [vmem:[%s1 + $0x30] sm:$0xff]
  %v28 = vld [vmem:[%s1 + $0x38] sm:$0xff]
  %v29 = vld [vmem:[%s1 + $0x40] sm:$0xff]
  %v30 = vld [vmem:[%s1 + $0x48] sm:$0xff]
  %v31 = vld [vmem:[%s1 + $0x50] sm:$0xff]
  %v32 = vld [vmem:[%s1 + $0x58] sm:$0xff]
  %v33 = vld [vmem:[%s1 + $0x60] sm:$0xff]
  %v34 = vld [vmem:[%s1 + $0x68] sm:$0xff]
  %v35 = vld [vmem:[%s1 + $0x70] sm:$0xff]
  %v36 = vld [vmem:[%s1 + $0x78] sm:$0xff]
  %v37 = vld [vmem:[%s0] sm:$0xff]
  %v38 = vld [vmem:[%s0 + $0x8] sm:$0xff]
  %v39 = vld [vmem:[%s0 + $0x10] sm:$0xff]
  %v40 = vld [vmem:[%s0 + $0x18] sm:$0xff]
  %v41 = vld [vmem:[%s0 + $0x20] sm:$0xff]
  %v42 = vld [vmem:[%s0 + $0x28] sm:$0xff]
  %v43 = vld [vmem:[%s0 + $0x30] sm:$0xff]
  %v44 = vld [vmem:[%s0 + $0x38] sm:$0xff]
  %v45 = vlaneseq
  %v46 = vshrl.u32 %v45, 7
  %v47 = vsub.s32 0, %v46
  %v48 = vrot.slane %v20, %v47
  %vm49 = vcmask 130048
  %v51 = vsel %vm49, %v37, 0
  %v54 = vsel %vm49, %v38, 0
  %v57 = vsel %vm49, %v39, 0
  %v60 = vsel %vm49, %v40, 0
  %v63 = vsel %vm49, %v41, 0
  %v66 = vsel %vm49, %v42, 0
  %v69 = vsel %vm49, %v43, 0
  %v72 = vsel %vm49, %v44, 0
  %74 = vmatprep.subr.mxu0 0.0
  %75 = vmatpush1.msra.mxu0 0.0
  %76 = vmatprep.subr.mxu0 0.0
  %77 = vmatpush1.msra.mxu0 0.0
  %78 = vmatprep.subr.mxu0 0.0
  %79 = vmatpush1.msra.mxu0 0.0
  %80 = vmatprep.subr.mxu0 0.0
  %81 = vmatpush1.msra.mxu0 0.0
  %82 = vmatprep.subr.mxu0 0.0
  %83 = vmatpush1.msra.mxu0 0.0
  %84 = vmatprep.subr.mxu0 0.0
  %85 = vmatpush1.msra.mxu0 0.0
  %86 = vmatprep.subr.mxu0 0.0
  %87 = vmatpush1.msra.mxu0 0.0
  %88 = vmatprep.subr.mxu0 0.0
  %89 = vmatpush1.msra.mxu0 0.0
  %90 = vmatprep.subr.mxu0 0.0
  %91 = vmatpush1.msra.mxu0 0.0
  %92 = vmatprep.subr.mxu0 0.0
  %93 = vmatpush1.msra.mxu0 0.0
  %94 = vmatprep.subr.mxu0 0.0
  %95 = vmatpush1.msra.mxu0 0.0
  %96 = vmatprep.subr.mxu0 0.0
  %97 = vmatpush1.msra.mxu0 0.0
  %98 = vmatprep.subr.mxu0 0.0
  %99 = vmatpush1.msra.mxu0 0.0
  %100 = vmatprep.subr.mxu0 0.0
  %101 = vmatpush1.msra.mxu0 0.0
  %102 = vmatprep.subr.mxu0 0.0
  %103 = vmatpush1.msra.mxu0 %v15
  %104 = vmatprep.subr.mxu0 0.0
  %105 = vmatpush1.msra.mxu0 %v14
  %106 = vmatprep.subr.mxu0 0.0
  %107 = vmatpush2.msra.mxu0 0.0
  %108 = vmatprep.subr.mxu0 0.0
  %109 = vmatpush2.msra.mxu0 0.0
  %110 = vmatprep.subr.mxu0 0.0
  %111 = vmatpush2.msra.mxu0 0.0
  %112 = vmatprep.subr.mxu0 0.0
  %113 = vmatpush2.msra.mxu0 0.0
  %114 = vmatprep.subr.mxu0 0.0
  %115 = vmatpush2.msra.mxu0 0.0
  %116 = vmatprep.subr.mxu0 0.0
  %117 = vmatpush2.msra.mxu0 0.0
  %118 = vmatprep.subr.mxu0 0.0
  %119 = vmatpush2.msra.mxu0 0.0
  %120 = vmatprep.subr.mxu0 0.0
  %121 = vmatpush2.msra.mxu0 0.0
  %122 = vmatprep.subr.mxu0 0.0
  %123 = vmatpush2.msra.mxu0 0.0
  %124 = vmatprep.subr.mxu0 0.0
  %125 = vmatpush2.msra.mxu0 0.0
  %126 = vmatprep.subr.mxu0 0.0
  %127 = vmatpush2.msra.mxu0 0.0
  %128 = vmatprep.subr.mxu0 0.0
  %129 = vmatpush2.msra.mxu0 0.0
  %130 = vmatprep.subr.mxu0 0.0
  %131 = vmatpush2.msra.mxu0 0.0
  %132 = vmatprep.subr.mxu0 0.0
  %133 = vmatpush2.msra.mxu0 0.0
  %134 = vmatprep.subr.mxu0 0.0
  %135 = vmatpush2.msra.mxu0 0.0
  %136 = vmatprep.subr.mxu0 0.0
  %137 = vmatpush2.msra.mxu0 0.0
  %138 = vmatprep.mubr.f32.mxu0 0.0
  %139 = vmatmul.mubr.f32.gmra.mxu0 %v51
  %v140 = vpop.f32.mrf.mxu0
  %v141 = vadd.f32 %v48, %v140
  %v142 = vpop.f32.mrf.mxu0
  %143 = vmatprep.mubr.f32.mxu0 0.0
  %144 = vmatmul.mubr.f32.gmra.mxu0 %v54
  %v145 = vpop.f32.mrf.mxu0
  %v146 = vadd.f32 %v48, %v145
  %v147 = vpop.f32.mrf.mxu0
  %148 = vmatprep.mubr.f32.mxu0 0.0
  %149 = vmatmul.mubr.f32.gmra.mxu0 %v57
  %v150 = vpop.f32.mrf.mxu0
  %v151 = vadd.f32 %v48, %v150
  %v152 = vpop.f32.mrf.mxu0
  %153 = vmatprep.mubr.f32.mxu0 0.0
  %154 = vmatmul.mubr.f32.gmra.mxu0 %v60
  %v155 = vpop.f32.mrf.mxu0
  %v156 = vadd.f32 %v48, %v155
  %v157 = vpop.f32.mrf.mxu0
  %158 = vmatprep.mubr.f32.mxu0 0.0
  %159 = vmatmul.mubr.f32.gmra.mxu0 %v63
  %v160 = vpop.f32.mrf.mxu0
  %v161 = vadd.f32 %v48, %v160
  %v162 = vpop.f32.mrf.mxu0
  %163 = vmatprep.mubr.f32.mxu0 0.0
  %164 = vmatmul.mubr.f32.gmra.mxu0 %v66
  %v165 = vpop.f32.mrf.mxu0
  %v166 = vadd.f32 %v48, %v165
  %v167 = vpop.f32.mrf.mxu0
  %168 = vmatprep.mubr.f32.mxu0 0.0
  %169 = vmatmul.mubr.f32.gmra.mxu0 %v69
  %v170 = vpop.f32.mrf.mxu0
  %v171 = vadd.f32 %v48, %v170
  %v172 = vpop.f32.mrf.mxu0
  %173 = vmatprep.mubr.f32.mxu0 0.0
  %174 = vmatmul.mubr.f32.gmra.mxu0 %v72
  %v175 = vpop.f32.mrf.mxu0
  %v176 = vadd.f32 %v48, %v175
  %v177 = vpop.f32.mrf.mxu0
  %178 = vdwg.mxu0
  %vm179 = vcmask 523264
  %v181 = vsel %vm179, 0.0, 0
  %183 = vmatprep.subr.mxu0 0.0
  %184 = vmatpush1.msra.mxu0 0.0
  %185 = vmatprep.subr.mxu0 0.0
  %186 = vmatpush1.msra.mxu0 0.0
  %187 = vmatprep.subr.mxu0 0.0
  %188 = vmatpush1.msra.mxu0 0.0
  %189 = vmatprep.subr.mxu0 0.0
  %190 = vmatpush1.msra.mxu0 0.0
  %191 = vmatprep.subr.mxu0 0.0
  %192 = vmatpush1.msra.mxu0 0.0
  %193 = vmatprep.subr.mxu0 0.0
  %194 = vmatpush1.msra.mxu0 0.0
  %195 = vmatprep.subr.mxu0 0.0
  %196 = vmatpush1.msra.mxu0 0.0
  %197 = vmatprep.subr.mxu0 0.0
  %198 = vmatpush1.msra.mxu0 0.0
  %199 = vmatprep.subr.mxu0 %v36
  %200 = vmatpush1.msra.mxu0 %v35
  %201 = vmatprep.subr.mxu0 %v34
  %202 = vmatpush1.msra.mxu0 %v33
  %203 = vmatprep.subr.mxu0 %v32
  %204 = vmatpush1.msra.mxu0 %v31
  %205 = vmatprep.subr.mxu0 %v30
  %206 = vmatpush1.msra.mxu0 %v29
  %207 = vmatprep.subr.mxu0 %v28
  %208 = vmatpush1.msra.mxu0 %v27
  %209 = vmatprep.subr.mxu0 %v26
  %210 = vmatpush1.msra.mxu0 %v25
  %211 = vmatprep.subr.mxu0 %v24
  %212 = vmatpush1.msra.mxu0 %v23
  %213 = vmatprep.subr.mxu0 %v22
  %214 = vmatpush1.msra.mxu0 %v21
  %215 = vmatprep.subr.mxu0 0.0
  %216 = vmatpush2.msra.mxu0 0.0
  %217 = vmatprep.subr.mxu0 0.0
  %218 = vmatpush2.msra.mxu0 0.0
  %219 = vmatprep.subr.mxu0 0.0
  %220 = vmatpush2.msra.mxu0 0.0
  %221 = vmatprep.subr.mxu0 0.0
  %222 = vmatpush2.msra.mxu0 0.0
  %223 = vmatprep.subr.mxu0 0.0
  %224 = vmatpush2.msra.mxu0 0.0
  %225 = vmatprep.subr.mxu0 0.0
  %226 = vmatpush2.msra.mxu0 0.0
  %227 = vmatprep.subr.mxu0 0.0
  %228 = vmatpush2.msra.mxu0 0.0
  %229 = vmatprep.subr.mxu0 0.0
  %230 = vmatpush2.msra.mxu0 0.0
  %231 = vmatprep.subr.mxu0 0.0
  %232 = vmatpush2.msra.mxu0 0.0
  %233 = vmatprep.subr.mxu0 0.0
  %234 = vmatpush2.msra.mxu0 0.0
  %235 = vmatprep.subr.mxu0 0.0
  %236 = vmatpush2.msra.mxu0 0.0
  %237 = vmatprep.subr.mxu0 0.0
  %238 = vmatpush2.msra.mxu0 0.0
  %239 = vmatprep.subr.mxu0 0.0
  %240 = vmatpush2.msra.mxu0 0.0
  %241 = vmatprep.subr.mxu0 0.0
  %242 = vmatpush2.msra.mxu0 0.0
  %243 = vmatprep.subr.mxu0 0.0
  %244 = vmatpush2.msra.mxu0 0.0
  %245 = vmatprep.subr.mxu0 0.0
  %246 = vmatpush2.msra.mxu0 0.0
  %247 = vmatprep.mubr.f32.mxu0 0.0
  %248 = vmatmul.mubr.f32.gmra.mxu0 %v181
  %v249 = vpop.f32.mrf.mxu0
  %v250 = vadd.f32 0.0, %v249
  %v251 = vpop.f32.mrf.mxu0
  %v252 = vadd.f32 0.0, %v251
  %253 = vdwg.mxu0
  %v254 = vadd.f32 %v141, %v250
  %v255 = vxor.u32 %v254, 2147483648
  %v256 = vmul.f32 %v255, 1.442695
  %v257 = vpow.pop %v256
  %v258 = vadd.f32 %v257, 1.0
  %v259 = vrcp.pop %v258
  %v260 = vmul.f32 1.0, %v259
  %v261 = vtanh.pop %v254
  %v262 = vmul.f32 %v260, 0.0
  %264 = vrot.lane.b32.xlu0 %v261, 64
  %v265 = vpop.permute.xlu0 %264
  %v267 = vmul.f32 %v260, %v265
  %269 = vrot.lane.b32.xlu0 %v267, 32
  %v270 = vpop.permute.xlu0 %269
  %v272 = vadd.f32 %v262, %v270
  %v273 = vtanh.pop %v272
  %275 = vrot.lane.b32.xlu0 %v273, 64
  %v276 = vpop.permute.xlu0 %275
  %v278 = vmul.f32 %v260, %v276
  %280 = vrot.lane.b32.xlu0 %v278, 32
  %v281 = vpop.permute.xlu0 %280
  %vm282 = vcmask 261120
  %v283 = vsel %vm282, %v281, 0
  %285 = vmatprep.subr.mxu0 0.0
  %286 = vmatpush1.msra.mxu0 0.0
  %287 = vmatprep.subr.mxu0 0.0
  %288 = vmatpush1.msra.mxu0 0.0
  %289 = vmatprep.subr.mxu0 0.0
  %290 = vmatpush1.msra.mxu0 0.0
  %291 = vmatprep.subr.mxu0 0.0
  %292 = vmatpush1.msra.mxu0 0.0
  %293 = vmatprep.subr.mxu0 0.0
  %294 = vmatpush1.msra.mxu0 0.0
  %295 = vmatprep.subr.mxu0 0.0
  %296 = vmatpush1.msra.mxu0 0.0
  %297 = vmatprep.subr.mxu0 0.0
  %298 = vmatpush1.msra.mxu0 0.0
  %299 = vmatprep.subr.mxu0 0.0
  %300 = vmatpush1.msra.mxu0 0.0
  %301 = vmatprep.subr.mxu0 0.0
  %302 = vmatpush1.msra.mxu0 0.0
  %303 = vmatprep.subr.mxu0 0.0
  %304 = vmatpush1.msra.mxu0 0.0
  %305 = vmatprep.subr.mxu0 0.0
  %306 = vmatpush1.msra.mxu0 0.0
  %307 = vmatprep.subr.mxu0 0.0
  %308 = vmatpush1.msra.mxu0 0.0
  %309 = vmatprep.subr.mxu0 0.0
  %310 = vmatpush1.msra.mxu0 %v19
  %311 = vmatprep.subr.mxu0 0.0
  %312 = vmatpush1.msra.mxu0 %v18
  %313 = vmatprep.subr.mxu0 0.0
  %314 = vmatpush1.msra.mxu0 %v17
  %315 = vmatprep.subr.mxu0 0.0
  %316 = vmatpush1.msra.mxu0 %v16
  %317 = vmatprep.subr.mxu0 0.0
  %318 = vmatpush2.msra.mxu0 0.0
  %319 = vmatprep.subr.mxu0 0.0
  %320 = vmatpush2.msra.mxu0 0.0
  %321 = vmatprep.subr.mxu0 0.0
  %322 = vmatpush2.msra.mxu0 0.0
  %323 = vmatprep.subr.mxu0 0.0
  %324 = vmatpush2.msra.mxu0 0.0
  %325 = vmatprep.subr.mxu0 0.0
  %326 = vmatpush2.msra.mxu0 0.0
  %327 = vmatprep.subr.mxu0 0.0
  %328 = vmatpush2.msra.mxu0 0.0
  %329 = vmatprep.subr.mxu0 0.0
  %330 = vmatpush2.msra.mxu0 0.0
  %331 = vmatprep.subr.mxu0 0.0
  %332 = vmatpush2.msra.mxu0 0.0
  %333 = vmatprep.subr.mxu0 0.0
  %334 = vmatpush2.msra.mxu0 0.0
  %335 = vmatprep.subr.mxu0 0.0
  %336 = vmatpush2.msra.mxu0 0.0
  %337 = vmatprep.subr.mxu0 0.0
  %338 = vmatpush2.msra.mxu0 0.0
  %339 = vmatprep.subr.mxu0 0.0
  %340 = vmatpush2.msra.mxu0 0.0
  %341 = vmatprep.subr.mxu0 0.0
  %342 = vmatpush2.msra.mxu0 0.0
  %343 = vmatprep.subr.mxu0 0.0
  %344 = vmatpush2.msra.mxu0 0.0
  %345 = vmatprep.subr.mxu0 0.0
  %346 = vmatpush2.msra.mxu0 0.0
  %347 = vmatprep.subr.mxu0 0.0
  %348 = vmatpush2.msra.mxu0 0.0
  %349 = vmatprep.mubr.f32.mxu0 0.0
  %350 = vmatmul.mubr.f32.gmra.mxu0 %v283
  %v351 = vpop.f32.mrf.mxu0
  %v352 = vadd.f32 %v252, %v351
  %v353 = vpop.f32.mrf.mxu0
  %354 = vdwg.mxu0
  %v355 = vlaneseq
  %v356 = vshrl.u32 %v355, 7
  %v357 = vsub.s32 1, %v356
  %v358 = vrot.slane %v20, %v357
  %v359 = vadd.f32 %v352, %v358
  %v360 = vxor.u32 %v359, 2147483648
  %v361 = vmul.f32 %v360, 1.442695
  %v362 = vpow.pop %v361
  %v363 = vadd.f32 %v362, 1.0
  %v364 = vrcp.pop %v363
  %v365 = vmul.f32 1.0, %v364
  %v366 = vtanh.pop %v359
  %v367 = vmul.f32 %v365, 0.0
  %369 = vrot.lane.b32.xlu0 %v366, 64
  %v370 = vpop.permute.xlu0 %369
  %v372 = vmul.f32 %v365, %v370
  %374 = vrot.lane.b32.xlu0 %v372, 32
  %v375 = vpop.permute.xlu0 %374
  %v377 = vadd.f32 %v367, %v375
  %v378 = vtanh.pop %v377
  %380 = vrot.lane.b32.xlu0 %v378, 64
  %v381 = vpop.permute.xlu0 %380
  %v383 = vmul.f32 %v365, %v381
  %386 = vrot.lane.b32.xlu0 %v383, 64
  %v387 = vpop.permute.xlu0 %386
  %v389 = vsel %vm282, %v281, %v387
  %v391 = vsel %vm179, %v389, 0
  %393 = vmatprep.subr.mxu0 0.0
  %394 = vmatpush1.msra.mxu0 0.0
  %395 = vmatprep.subr.mxu0 0.0
  %396 = vmatpush1.msra.mxu0 0.0
  %397 = vmatprep.subr.mxu0 0.0
  %398 = vmatpush1.msra.mxu0 0.0
  %399 = vmatprep.subr.mxu0 0.0
  %400 = vmatpush1.msra.mxu0 0.0
  %401 = vmatprep.subr.mxu0 0.0
  %402 = vmatpush1.msra.mxu0 0.0
  %403 = vmatprep.subr.mxu0 0.0
  %404 = vmatpush1.msra.mxu0 0.0
  %405 = vmatprep.subr.mxu0 0.0
  %406 = vmatpush1.msra.mxu0 0.0
  %407 = vmatprep.subr.mxu0 0.0
  %408 = vmatpush1.msra.mxu0 0.0
  %409 = vmatprep.subr.mxu0 %v36
  %410 = vmatpush1.msra.mxu0 %v35
  %411 = vmatprep.subr.mxu0 %v34
  %412 = vmatpush1.msra.mxu0 %v33
  %413 = vmatprep.subr.mxu0 %v32
  %414 = vmatpush1.msra.mxu0 %v31
  %415 = vmatprep.subr.mxu0 %v30
  %416 = vmatpush1.msra.mxu0 %v29
  %417 = vmatprep.subr.mxu0 %v28
  %418 = vmatpush1.msra.mxu0 %v27
  %419 = vmatprep.subr.mxu0 %v26
  %420 = vmatpush1.msra.mxu0 %v25
  %421 = vmatprep.subr.mxu0 %v24
  %422 = vmatpush1.msra.mxu0 %v23
  %423 = vmatprep.subr.mxu0 %v22
  %424 = vmatpush1.msra.mxu0 %v21
  %425 = vmatprep.subr.mxu0 0.0
  %426 = vmatpush2.msra.mxu0 0.0
  %427 = vmatprep.subr.mxu0 0.0
  %428 = vmatpush2.msra.mxu0 0.0
  %429 = vmatprep.subr.mxu0 0.0
  %430 = vmatpush2.msra.mxu0 0.0
  %431 = vmatprep.subr.mxu0 0.0
  %432 = vmatpush2.msra.mxu0 0.0
  %433 = vmatprep.subr.mxu0 0.0
  %434 = vmatpush2.msra.mxu0 0.0
  %435 = vmatprep.subr.mxu0 0.0
  %436 = vmatpush2.msra.mxu0 0.0
  %437 = vmatprep.subr.mxu0 0.0
  %438 = vmatpush2.msra.mxu0 0.0
  %439 = vmatprep.subr.mxu0 0.0
  %440 = vmatpush2.msra.mxu0 0.0
  %441 = vmatprep.subr.mxu0 0.0
  %442 = vmatpush2.msra.mxu0 0.0
  %443 = vmatprep.subr.mxu0 0.0
  %444 = vmatpush2.msra.mxu0 0.0
  %445 = vmatprep.subr.mxu0 0.0
  %446 = vmatpush2.msra.mxu0 0.0
  %447 = vmatprep.subr.mxu0 0.0
  %448 = vmatpush2.msra.mxu0 0.0
  %449 = vmatprep.subr.mxu0 0.0
  %450 = vmatpush2.msra.mxu0 0.0
  %451 = vmatprep.subr.mxu0 0.0
  %452 = vmatpush2.msra.mxu0 0.0
  %453 = vmatprep.subr.mxu0 0.0
  %454 = vmatpush2.msra.mxu0 0.0
  %455 = vmatprep.subr.mxu0 0.0
  %456 = vmatpush2.msra.mxu0 0.0
  %457 = vmatprep.mubr.f32.mxu0 0.0
  %458 = vmatmul.mubr.f32.gmra.mxu0 %v391
  %v459 = vpop.f32.mrf.mxu0
  %v460 = vadd.f32 0.0, %v459
  %v461 = vpop.f32.mrf.mxu0
  %v462 = vadd.f32 0.0, %v461
  %463 = vdwg.mxu0
  %v464 = vadd.f32 %v146, %v460
  %v465 = vxor.u32 %v464, 2147483648
  %v466 = vmul.f32 %v465, 1.442695
  %v467 = vpow.pop %v466
  %v468 = vadd.f32 %v467, 1.0
  %v469 = vrcp.pop %v468
  %v470 = vmul.f32 1.0, %v469
  %v471 = vtanh.pop %v464
  %v472 = vmul.f32 %v470, %v272
  %474 = vrot.lane.b32.xlu0 %v471, 64
  %v475 = vpop.permute.xlu0 %474
  %v477 = vmul.f32 %v470, %v475
  %479 = vrot.lane.b32.xlu0 %v477, 32
  %v480 = vpop.permute.xlu0 %479
  %v482 = vadd.f32 %v472, %v480
  %v483 = vtanh.pop %v482
  %485 = vrot.lane.b32.xlu0 %v483, 64
  %v486 = vpop.permute.xlu0 %485
  %v488 = vmul.f32 %v470, %v486
  %490 = vrot.lane.b32.xlu0 %v488, 32
  %v491 = vpop.permute.xlu0 %490
  %v492 = vsel %vm282, %v491, 0
  %494 = vmatprep.subr.mxu0 0.0
  %495 = vmatpush1.msra.mxu0 0.0
  %496 = vmatprep.subr.mxu0 0.0
  %497 = vmatpush1.msra.mxu0 0.0
  %498 = vmatprep.subr.mxu0 0.0
  %499 = vmatpush1.msra.mxu0 0.0
  %500 = vmatprep.subr.mxu0 0.0
  %501 = vmatpush1.msra.mxu0 0.0
  %502 = vmatprep.subr.mxu0 0.0
  %503 = vmatpush1.msra.mxu0 0.0
  %504 = vmatprep.subr.mxu0 0.0
  %505 = vmatpush1.msra.mxu0 0.0
  %506 = vmatprep.subr.mxu0 0.0
  %507 = vmatpush1.msra.mxu0 0.0
  %508 = vmatprep.subr.mxu0 0.0
  %509 = vmatpush1.msra.mxu0 0.0
  %510 = vmatprep.subr.mxu0 0.0
  %511 = vmatpush1.msra.mxu0 0.0
  %512 = vmatprep.subr.mxu0 0.0
  %513 = vmatpush1.msra.mxu0 0.0
  %514 = vmatprep.subr.mxu0 0.0
  %515 = vmatpush1.msra.mxu0 0.0
  %516 = vmatprep.subr.mxu0 0.0
  %517 = vmatpush1.msra.mxu0 0.0
  %518 = vmatprep.subr.mxu0 0.0
  %519 = vmatpush1.msra.mxu0 %v19
  %520 = vmatprep.subr.mxu0 0.0
  %521 = vmatpush1.msra.mxu0 %v18
  %522 = vmatprep.subr.mxu0 0.0
  %523 = vmatpush1.msra.mxu0 %v17
  %524 = vmatprep.subr.mxu0 0.0
  %525 = vmatpush1.msra.mxu0 %v16
  %526 = vmatprep.subr.mxu0 0.0
  %527 = vmatpush2.msra.mxu0 0.0
  %528 = vmatprep.subr.mxu0 0.0
  %529 = vmatpush2.msra.mxu0 0.0
  %530 = vmatprep.subr.mxu0 0.0
  %531 = vmatpush2.msra.mxu0 0.0
  %532 = vmatprep.subr.mxu0 0.0
  %533 = vmatpush2.msra.mxu0 0.0
  %534 = vmatprep.subr.mxu0 0.0
  %535 = vmatpush2.msra.mxu0 0.0
  %536 = vmatprep.subr.mxu0 0.0
  %537 = vmatpush2.msra.mxu0 0.0
  %538 = vmatprep.subr.mxu0 0.0
  %539 = vmatpush2.msra.mxu0 0.0
  %540 = vmatprep.subr.mxu0 0.0
  %541 = vmatpush2.msra.mxu0 0.0
  %542 = vmatprep.subr.mxu0 0.0
  %543 = vmatpush2.msra.mxu0 0.0
  %544 = vmatprep.subr.mxu0 0.0
  %545 = vmatpush2.msra.mxu0 0.0
  %546 = vmatprep.subr.mxu0 0.0
  %547 = vmatpush2.msra.mxu0 0.0
  %548 = vmatprep.subr.mxu0 0.0
  %549 = vmatpush2.msra.mxu0 0.0
  %550 = vmatprep.subr.mxu0 0.0
  %551 = vmatpush2.msra.mxu0 0.0
  %552 = vmatprep.subr.mxu0 0.0
  %553 = vmatpush2.msra.mxu0 0.0
  %554 = vmatprep.subr.mxu0 0.0
  %555 = vmatpush2.msra.mxu0 0.0
  %556 = vmatprep.subr.mxu0 0.0
  %557 = vmatpush2.msra.mxu0 0.0
  %558 = vmatprep.mubr.f32.mxu0 0.0
  %559 = vmatmul.mubr.f32.gmra.mxu0 %v492
  %v560 = vpop.f32.mrf.mxu0
  %v561 = vadd.f32 %v462, %v560
  %v562 = vpop.f32.mrf.mxu0
  %563 = vdwg.mxu0
  %v564 = vadd.f32 %v561, %v358
  %v565 = vxor.u32 %v564, 2147483648
  %v566 = vmul.f32 %v565, 1.442695
  %v567 = vpow.pop %v566
  %v568 = vadd.f32 %v567, 1.0
  %v569 = vrcp.pop %v568
  %v570 = vmul.f32 1.0, %v569
  %v571 = vtanh.pop %v564
  %v572 = vmul.f32 %v570, %v377
  %574 = vrot.lane.b32.xlu0 %v571, 64
  %v575 = vpop.permute.xlu0 %574
  %v577 = vmul.f32 %v570, %v575
  %579 = vrot.lane.b32.xlu0 %v577, 32
  %v580 = vpop.permute.xlu0 %579
  %v582 = vadd.f32 %v572, %v580
  %v583 = vtanh.pop %v582
  %585 = vrot.lane.b32.xlu0 %v583, 64
  %v586 = vpop.permute.xlu0 %585
  %v588 = vmul.f32 %v570, %v586
  %591 = vrot.lane.b32.xlu0 %v588, 64
  %v592 = vpop.permute.xlu0 %591
  %v594 = vsel %vm282, %v491, %v592
  %v596 = vsel %vm179, %v594, 0
  %598 = vmatprep.subr.mxu0 0.0
  %599 = vmatpush1.msra.mxu0 0.0
  %600 = vmatprep.subr.mxu0 0.0
  %601 = vmatpush1.msra.mxu0 0.0
  %602 = vmatprep.subr.mxu0 0.0
  %603 = vmatpush1.msra.mxu0 0.0
  %604 = vmatprep.subr.mxu0 0.0
  %605 = vmatpush1.msra.mxu0 0.0
  %606 = vmatprep.subr.mxu0 0.0
  %607 = vmatpush1.msra.mxu0 0.0
  %608 = vmatprep.subr.mxu0 0.0
  %609 = vmatpush1.msra.mxu0 0.0
  %610 = vmatprep.subr.mxu0 0.0
  %611 = vmatpush1.msra.mxu0 0.0
  %612 = vmatprep.subr.mxu0 0.0
  %613 = vmatpush1.msra.mxu0 0.0
  %614 = vmatprep.subr.mxu0 %v36
  %615 = vmatpush1.msra.mxu0 %v35
  %616 = vmatprep.subr.mxu0 %v34
  %617 = vmatpush1.msra.mxu0 %v33
  %618 = vmatprep.subr.mxu0 %v32
  %619 = vmatpush1.msra.mxu0 %v31
  %620 = vmatprep.subr.mxu0 %v30
  %621 = vmatpush1.msra.mxu0 %v29
  %622 = vmatprep.subr.mxu0 %v28
  %623 = vmatpush1.msra.mxu0 %v27
  %624 = vmatprep.subr.mxu0 %v26
  %625 = vmatpush1.msra.mxu0 %v25
  %626 = vmatprep.subr.mxu0 %v24
  %627 = vmatpush1.msra.mxu0 %v23
  %628 = vmatprep.subr.mxu0 %v22
  %629 = vmatpush1.msra.mxu0 %v21
  %630 = vmatprep.subr.mxu0 0.0
  %631 = vmatpush2.msra.mxu0 0.0
  %632 = vmatprep.subr.mxu0 0.0
  %633 = vmatpush2.msra.mxu0 0.0
  %634 = vmatprep.subr.mxu0 0.0
  %635 = vmatpush2.msra.mxu0 0.0
  %636 = vmatprep.subr.mxu0 0.0
  %637 = vmatpush2.msra.mxu0 0.0
  %638 = vmatprep.subr.mxu0 0.0
  %639 = vmatpush2.msra.mxu0 0.0
  %640 = vmatprep.subr.mxu0 0.0
  %641 = vmatpush2.msra.mxu0 0.0
  %642 = vmatprep.subr.mxu0 0.0
  %643 = vmatpush2.msra.mxu0 0.0
  %644 = vmatprep.subr.mxu0 0.0
  %645 = vmatpush2.msra.mxu0 0.0
  %646 = vmatprep.subr.mxu0 0.0
  %647 = vmatpush2.msra.mxu0 0.0
  %648 = vmatprep.subr.mxu0 0.0
  %649 = vmatpush2.msra.mxu0 0.0
  %650 = vmatprep.subr.mxu0 0.0
  %651 = vmatpush2.msra.mxu0 0.0
  %652 = vmatprep.subr.mxu0 0.0
  %653 = vmatpush2.msra.mxu0 0.0
  %654 = vmatprep.subr.mxu0 0.0
  %655 = vmatpush2.msra.mxu0 0.0
  %656 = vmatprep.subr.mxu0 0.0
  %657 = vmatpush2.msra.mxu0 0.0
  %658 = vmatprep.subr.mxu0 0.0
  %659 = vmatpush2.msra.mxu0 0.0
  %660 = vmatprep.subr.mxu0 0.0
  %661 = vmatpush2.msra.mxu0 0.0
  %662 = vmatprep.mubr.f32.mxu0 0.0
  %663 = vmatmul.mubr.f32.gmra.mxu0 %v596
  %v664 = vpop.f32.mrf.mxu0
  %v665 = vadd.f32 0.0, %v664
  %v666 = vpop.f32.mrf.mxu0
  %v667 = vadd.f32 0.0, %v666
  %668 = vdwg.mxu0
  %v669 = vadd.f32 %v151, %v665
  %v670 = vxor.u32 %v669, 2147483648
  %v671 = vmul.f32 %v670, 1.442695
  %v672 = vpow.pop %v671
  %v673 = vadd.f32 %v672, 1.0
  %v674 = vrcp.pop %v673
  %v675 = vmul.f32 1.0, %v674
  %v676 = vtanh.pop %v669
  %v677 = vmul.f32 %v675, %v482
  %679 = vrot.lane.b32.xlu0 %v676, 64
  %v680 = vpop.permute.xlu0 %679
  %v682 = vmul.f32 %v675, %v680
  %684 = vrot.lane.b32.xlu0 %v682, 32
  %v685 = vpop.permute.xlu0 %684
  %v687 = vadd.f32 %v677, %v685
  %v688 = vtanh.pop %v687
  %690 = vrot.lane.b32.xlu0 %v688, 64
  %v691 = vpop.permute.xlu0 %690
  %v693 = vmul.f32 %v675, %v691
  %695 = vrot.lane.b32.xlu0 %v693, 32
  %v696 = vpop.permute.xlu0 %695
  %v697 = vsel %vm282, %v696, 0
  %699 = vmatprep.subr.mxu0 0.0
  %700 = vmatpush1.msra.mxu0 0.0
  %701 = vmatprep.subr.mxu0 0.0
  %702 = vmatpush1.msra.mxu0 0.0
  %703 = vmatprep.subr.mxu0 0.0
  %704 = vmatpush1.msra.mxu0 0.0
  %705 = vmatprep.subr.mxu0 0.0
  %706 = vmatpush1.msra.mxu0 0.0
  %707 = vmatprep.subr.mxu0 0.0
  %708 = vmatpush1.msra.mxu0 0.0
  %709 = vmatprep.subr.mxu0 0.0
  %710 = vmatpush1.msra.mxu0 0.0
  %711 = vmatprep.subr.mxu0 0.0
  %712 = vmatpush1.msra.mxu0 0.0
  %713 = vmatprep.subr.mxu0 0.0
  %714 = vmatpush1.msra.mxu0 0.0
  %715 = vmatprep.subr.mxu0 0.0
  %716 = vmatpush1.msra.mxu0 0.0
  %717 = vmatprep.subr.mxu0 0.0
  %718 = vmatpush1.msra.mxu0 0.0
  %719 = vmatprep.subr.mxu0 0.0
  %720 = vmatpush1.msra.mxu0 0.0
  %721 = vmatprep.subr.mxu0 0.0
  %722 = vmatpush1.msra.mxu0 0.0
  %723 = vmatprep.subr.mxu0 0.0
  %724 = vmatpush1.msra.mxu0 %v19
  %725 = vmatprep.subr.mxu0 0.0
  %726 = vmatpush1.msra.mxu0 %v18
  %727 = vmatprep.subr.mxu0 0.0
  %728 = vmatpush1.msra.mxu0 %v17
  %729 = vmatprep.subr.mxu0 0.0
  %730 = vmatpush1.msra.mxu0 %v16
  %731 = vmatprep.subr.mxu0 0.0
  %732 = vmatpush2.msra.mxu0 0.0
  %733 = vmatprep.subr.mxu0 0.0
  %734 = vmatpush2.msra.mxu0 0.0
  %735 = vmatprep.subr.mxu0 0.0
  %736 = vmatpush2.msra.mxu0 0.0
  %737 = vmatprep.subr.mxu0 0.0
  %738 = vmatpush2.msra.mxu0 0.0
  %739 = vmatprep.subr.mxu0 0.0
  %740 = vmatpush2.msra.mxu0 0.0
  %741 = vmatprep.subr.mxu0 0.0
  %742 = vmatpush2.msra.mxu0 0.0
  %743 = vmatprep.subr.mxu0 0.0
  %744 = vmatpush2.msra.mxu0 0.0
  %745 = vmatprep.subr.mxu0 0.0
  %746 = vmatpush2.msra.mxu0 0.0
  %747 = vmatprep.subr.mxu0 0.0
  %748 = vmatpush2.msra.mxu0 0.0
  %749 = vmatprep.subr.mxu0 0.0
  %750 = vmatpush2.msra.mxu0 0.0
  %751 = vmatprep.subr.mxu0 0.0
  %752 = vmatpush2.msra.mxu0 0.0
  %753 = vmatprep.subr.mxu0 0.0
  %754 = vmatpush2.msra.mxu0 0.0
  %755 = vmatprep.subr.mxu0 0.0
  %756 = vmatpush2.msra.mxu0 0.0
  %757 = vmatprep.subr.mxu0 0.0
  %758 = vmatpush2.msra.mxu0 0.0
  %759 = vmatprep.subr.mxu0 0.0
  %760 = vmatpush2.msra.mxu0 0.0
  %761 = vmatprep.subr.mxu0 0.0
  %762 = vmatpush2.msra.mxu0 0.0
  %763 = vmatprep.mubr.f32.mxu0 0.0
  %764 = vmatmul.mubr.f32.gmra.mxu0 %v697
  %v765 = vpop.f32.mrf.mxu0
  %v766 = vadd.f32 %v667, %v765
  %v767 = vpop.f32.mrf.mxu0
  %768 = vdwg.mxu0
  %v769 = vadd.f32 %v766, %v358
  %v770 = vxor.u32 %v769, 2147483648
  %v771 = vmul.f32 %v770, 1.442695
  %v772 = vpow.pop %v771
  %v773 = vadd.f32 %v772, 1.0
  %v774 = vrcp.pop %v773
  %v775 = vmul.f32 1.0, %v774
  %v776 = vtanh.pop %v769
  %v777 = vmul.f32 %v775, %v582
  %779 = vrot.lane.b32.xlu0 %v776, 64
  %v780 = vpop.permute.xlu0 %779
  %v782 = vmul.f32 %v775, %v780
  %784 = vrot.lane.b32.xlu0 %v782, 32
  %v785 = vpop.permute.xlu0 %784
  %v787 = vadd.f32 %v777, %v785
  %v788 = vtanh.pop %v787
  %790 = vrot.lane.b32.xlu0 %v788, 64
  %v791 = vpop.permute.xlu0 %790
  %v793 = vmul.f32 %v775, %v791
  %796 = vrot.lane.b32.xlu0 %v793, 64
  %v797 = vpop.permute.xlu0 %796
  %v799 = vsel %vm282, %v696, %v797
  %v801 = vsel %vm179, %v799, 0
  %803 = vmatprep.subr.mxu0 0.0
  %804 = vmatpush1.msra.mxu0 0.0
  %805 = vmatprep.subr.mxu0 0.0
  %806 = vmatpush1.msra.mxu0 0.0
  %807 = vmatprep.subr.mxu0 0.0
  %808 = vmatpush1.msra.mxu0 0.0
  %809 = vmatprep.subr.mxu0 0.0
  %810 = vmatpush1.msra.mxu0 0.0
  %811 = vmatprep.subr.mxu0 0.0
  %812 = vmatpush1.msra.mxu0 0.0
  %813 = vmatprep.subr.mxu0 0.0
  %814 = vmatpush1.msra.mxu0 0.0
  %815 = vmatprep.subr.mxu0 0.0
  %816 = vmatpush1.msra.mxu0 0.0
  %817 = vmatprep.subr.mxu0 0.0
  %818 = vmatpush1.msra.mxu0 0.0
  %819 = vmatprep.subr.mxu0 %v36
  %820 = vmatpush1.msra.mxu0 %v35
  %821 = vmatprep.subr.mxu0 %v34
  %822 = vmatpush1.msra.mxu0 %v33
  %823 = vmatprep.subr.mxu0 %v32
  %824 = vmatpush1.msra.mxu0 %v31
  %825 = vmatprep.subr.mxu0 %v30
  %826 = vmatpush1.msra.mxu0 %v29
  %827 = vmatprep.subr.mxu0 %v28
  %828 = vmatpush1.msra.mxu0 %v27
  %829 = vmatprep.subr.mxu0 %v26
  %830 = vmatpush1.msra.mxu0 %v25
  %831 = vmatprep.subr.mxu0 %v24
  %832 = vmatpush1.msra.mxu0 %v23
  %833 = vmatprep.subr.mxu0 %v22
  %834 = vmatpush1.msra.mxu0 %v21
  %835 = vmatprep.subr.mxu0 0.0
  %836 = vmatpush2.msra.mxu0 0.0
  %837 = vmatprep.subr.mxu0 0.0
  %838 = vmatpush2.msra.mxu0 0.0
  %839 = vmatprep.subr.mxu0 0.0
  %840 = vmatpush2.msra.mxu0 0.0
  %841 = vmatprep.subr.mxu0 0.0
  %842 = vmatpush2.msra.mxu0 0.0
  %843 = vmatprep.subr.mxu0 0.0
  %844 = vmatpush2.msra.mxu0 0.0
  %845 = vmatprep.subr.mxu0 0.0
  %846 = vmatpush2.msra.mxu0 0.0
  %847 = vmatprep.subr.mxu0 0.0
  %848 = vmatpush2.msra.mxu0 0.0
  %849 = vmatprep.subr.mxu0 0.0
  %850 = vmatpush2.msra.mxu0 0.0
  %851 = vmatprep.subr.mxu0 0.0
  %852 = vmatpush2.msra.mxu0 0.0
  %853 = vmatprep.subr.mxu0 0.0
  %854 = vmatpush2.msra.mxu0 0.0
  %855 = vmatprep.subr.mxu0 0.0
  %856 = vmatpush2.msra.mxu0 0.0
  %857 = vmatprep.subr.mxu0 0.0
  %858 = vmatpush2.msra.mxu0 0.0
  %859 = vmatprep.subr.mxu0 0.0
  %860 = vmatpush2.msra.mxu0 0.0
  %861 = vmatprep.subr.mxu0 0.0
  %862 = vmatpush2.msra.mxu0 0.0
  %863 = vmatprep.subr.mxu0 0.0
  %864 = vmatpush2.msra.mxu0 0.0
  %865 = vmatprep.subr.mxu0 0.0
  %866 = vmatpush2.msra.mxu0 0.0
  %867 = vmatprep.mubr.f32.mxu0 0.0
  %868 = vmatmul.mubr.f32.gmra.mxu0 %v801
  %v869 = vpop.f32.mrf.mxu0
  %v870 = vadd.f32 0.0, %v869
  %v871 = vpop.f32.mrf.mxu0
  %v872 = vadd.f32 0.0, %v871
  %873 = vdwg.mxu0
  %v874 = vadd.f32 %v156, %v870
  %v875 = vxor.u32 %v874, 2147483648
  %v876 = vmul.f32 %v875, 1.442695
  %v877 = vpow.pop %v876
  %v878 = vadd.f32 %v877, 1.0
  %v879 = vrcp.pop %v878
  %v880 = vmul.f32 1.0, %v879
  %v881 = vtanh.pop %v874
  %v882 = vmul.f32 %v880, %v687
  %884 = vrot.lane.b32.xlu0 %v881, 64
  %v885 = vpop.permute.xlu0 %884
  %v887 = vmul.f32 %v880, %v885
  %889 = vrot.lane.b32.xlu0 %v887, 32
  %v890 = vpop.permute.xlu0 %889
  %v892 = vadd.f32 %v882, %v890
  %v893 = vtanh.pop %v892
  %895 = vrot.lane.b32.xlu0 %v893, 64
  %v896 = vpop.permute.xlu0 %895
  %v898 = vmul.f32 %v880, %v896
  %900 = vrot.lane.b32.xlu0 %v898, 32
  %v901 = vpop.permute.xlu0 %900
  %v902 = vsel %vm282, %v901, 0
  %904 = vmatprep.subr.mxu0 0.0
  %905 = vmatpush1.msra.mxu0 0.0
  %906 = vmatprep.subr.mxu0 0.0
  %907 = vmatpush1.msra.mxu0 0.0
  %908 = vmatprep.subr.mxu0 0.0
  %909 = vmatpush1.msra.mxu0 0.0
  %910 = vmatprep.subr.mxu0 0.0
  %911 = vmatpush1.msra.mxu0 0.0
  %912 = vmatprep.subr.mxu0 0.0
  %913 = vmatpush1.msra.mxu0 0.0
  %914 = vmatprep.subr.mxu0 0.0
  %915 = vmatpush1.msra.mxu0 0.0
  %916 = vmatprep.subr.mxu0 0.0
  %917 = vmatpush1.msra.mxu0 0.0
  %918 = vmatprep.subr.mxu0 0.0
  %919 = vmatpush1.msra.mxu0 0.0
  %920 = vmatprep.subr.mxu0 0.0
  %921 = vmatpush1.msra.mxu0 0.0
  %922 = vmatprep.subr.mxu0 0.0
  %923 = vmatpush1.msra.mxu0 0.0
  %924 = vmatprep.subr.mxu0 0.0
  %925 = vmatpush1.msra.mxu0 0.0
  %926 = vmatprep.subr.mxu0 0.0
  %927 = vmatpush1.msra.mxu0 0.0
  %928 = vmatprep.subr.mxu0 0.0
  %929 = vmatpush1.msra.mxu0 %v19
  %930 = vmatprep.subr.mxu0 0.0
  %931 = vmatpush1.msra.mxu0 %v18
  %932 = vmatprep.subr.mxu0 0.0
  %933 = vmatpush1.msra.mxu0 %v17
  %934 = vmatprep.subr.mxu0 0.0
  %935 = vmatpush1.msra.mxu0 %v16
  %936 = vmatprep.subr.mxu0 0.0
  %937 = vmatpush2.msra.mxu0 0.0
  %938 = vmatprep.subr.mxu0 0.0
  %939 = vmatpush2.msra.mxu0 0.0
  %940 = vmatprep.subr.mxu0 0.0
  %941 = vmatpush2.msra.mxu0 0.0
  %942 = vmatprep.subr.mxu0 0.0
  %943 = vmatpush2.msra.mxu0 0.0
  %944 = vmatprep.subr.mxu0 0.0
  %945 = vmatpush2.msra.mxu0 0.0
  %946 = vmatprep.subr.mxu0 0.0
  %947 = vmatpush2.msra.mxu0 0.0
  %948 = vmatprep.subr.mxu0 0.0
  %949 = vmatpush2.msra.mxu0 0.0
  %950 = vmatprep.subr.mxu0 0.0
  %951 = vmatpush2.msra.mxu0 0.0
  %952 = vmatprep.subr.mxu0 0.0
  %953 = vmatpush2.msra.mxu0 0.0
  %954 = vmatprep.subr.mxu0 0.0
  %955 = vmatpush2.msra.mxu0 0.0
  %956 = vmatprep.subr.mxu0 0.0
  %957 = vmatpush2.msra.mxu0 0.0
  %958 = vmatprep.subr.mxu0 0.0
  %959 = vmatpush2.msra.mxu0 0.0
  %960 = vmatprep.subr.mxu0 0.0
  %961 = vmatpush2.msra.mxu0 0.0
  %962 = vmatprep.subr.mxu0 0.0
  %963 = vmatpush2.msra.mxu0 0.0
  %964 = vmatprep.subr.mxu0 0.0
  %965 = vmatpush2.msra.mxu0 0.0
  %966 = vmatprep.subr.mxu0 0.0
  %967 = vmatpush2.msra.mxu0 0.0
  %968 = vmatprep.mubr.f32.mxu0 0.0
  %969 = vmatmul.mubr.f32.gmra.mxu0 %v902
  %v970 = vpop.f32.mrf.mxu0
  %v971 = vadd.f32 %v872, %v970
  %v972 = vpop.f32.mrf.mxu0
  %973 = vdwg.mxu0
  %v974 = vadd.f32 %v971, %v358
  %v975 = vxor.u32 %v974, 2147483648
  %v976 = vmul.f32 %v975, 1.442695
  %v977 = vpow.pop %v976
  %v978 = vadd.f32 %v977, 1.0
  %v979 = vrcp.pop %v978
  %v980 = vmul.f32 1.0, %v979
  %v981 = vtanh.pop %v974
  %v982 = vmul.f32 %v980, %v787
  %984 = vrot.lane.b32.xlu0 %v981, 64
  %v985 = vpop.permute.xlu0 %984
  %v987 = vmul.f32 %v980, %v985
  %989 = vrot.lane.b32.xlu0 %v987, 32
  %v990 = vpop.permute.xlu0 %989
  %v992 = vadd.f32 %v982, %v990
  %v993 = vtanh.pop %v992
  %995 = vrot.lane.b32.xlu0 %v993, 64
  %v996 = vpop.permute.xlu0 %995
  %v998 = vmul.f32 %v980, %v996
  %1001 = vrot.lane.b32.xlu0 %v998, 64
  %v1002 = vpop.permute.xlu0 %1001
  %v1004 = vsel %vm282, %v901, %v1002
  %v1006 = vsel %vm179, %v1004, 0
  %1008 = vmatprep.subr.mxu0 0.0
  %1009 = vmatpush1.msra.mxu0 0.0
  %1010 = vmatprep.subr.mxu0 0.0
  %1011 = vmatpush1.msra.mxu0 0.0
  %1012 = vmatprep.subr.mxu0 0.0
  %1013 = vmatpush1.msra.mxu0 0.0
  %1014 = vmatprep.subr.mxu0 0.0
  %1015 = vmatpush1.msra.mxu0 0.0
  %1016 = vmatprep.subr.mxu0 0.0
  %1017 = vmatpush1.msra.mxu0 0.0
  %1018 = vmatprep.subr.mxu0 0.0
  %1019 = vmatpush1.msra.mxu0 0.0
  %1020 = vmatprep.subr.mxu0 0.0
  %1021 = vmatpush1.msra.mxu0 0.0
  %1022 = vmatprep.subr.mxu0 0.0
  %1023 = vmatpush1.msra.mxu0 0.0
  %1024 = vmatprep.subr.mxu0 %v36
  %1025 = vmatpush1.msra.mxu0 %v35
  %1026 = vmatprep.subr.mxu0 %v34
  %1027 = vmatpush1.msra.mxu0 %v33
  %1028 = vmatprep.subr.mxu0 %v32
  %1029 = vmatpush1.msra.mxu0 %v31
  %1030 = vmatprep.subr.mxu0 %v30
  %1031 = vmatpush1.msra.mxu0 %v29
  %1032 = vmatprep.subr.mxu0 %v28
  %1033 = vmatpush1.msra.mxu0 %v27
  %1034 = vmatprep.subr.mxu0 %v26
  %1035 = vmatpush1.msra.mxu0 %v25
  %1036 = vmatprep.subr.mxu0 %v24
  %1037 = vmatpush1.msra.mxu0 %v23
  %1038 = vmatprep.subr.mxu0 %v22
  %1039 = vmatpush1.msra.mxu0 %v21
  %1040 = vmatprep.subr.mxu0 0.0
  %1041 = vmatpush2.msra.mxu0 0.0
  %1042 = vmatprep.subr.mxu0 0.0
  %1043 = vmatpush2.msra.mxu0 0.0
  %1044 = vmatprep.subr.mxu0 0.0
  %1045 = vmatpush2.msra.mxu0 0.0
  %1046 = vmatprep.subr.mxu0 0.0
  %1047 = vmatpush2.msra.mxu0 0.0
  %1048 = vmatprep.subr.mxu0 0.0
  %1049 = vmatpush2.msra.mxu0 0.0
  %1050 = vmatprep.subr.mxu0 0.0
  %1051 = vmatpush2.msra.mxu0 0.0
  %1052 = vmatprep.subr.mxu0 0.0
  %1053 = vmatpush2.msra.mxu0 0.0
  %1054 = vmatprep.subr.mxu0 0.0
  %1055 = vmatpush2.msra.mxu0 0.0
  %1056 = vmatprep.subr.mxu0 0.0
  %1057 = vmatpush2.msra.mxu0 0.0
  %1058 = vmatprep.subr.mxu0 0.0
  %1059 = vmatpush2.msra.mxu0 0.0
  %1060 = vmatprep.subr.mxu0 0.0
  %1061 = vmatpush2.msra.mxu0 0.0
  %1062 = vmatprep.subr.mxu0 0.0
  %1063 = vmatpush2.msra.mxu0 0.0
  %1064 = vmatprep.subr.mxu0 0.0
  %1065 = vmatpush2.msra.mxu0 0.0
  %1066 = vmatprep.subr.mxu0 0.0
  %1067 = vmatpush2.msra.mxu0 0.0
  %1068 = vmatprep.subr.mxu0 0.0
  %1069 = vmatpush2.msra.mxu0 0.0
  %1070 = vmatprep.subr.mxu0 0.0
  %1071 = vmatpush2.msra.mxu0 0.0
  %1072 = vmatprep.mubr.f32.mxu0 0.0
  %1073 = vmatmul.mubr.f32.gmra.mxu0 %v1006
  %v1074 = vpop.f32.mrf.mxu0
  %v1075 = vadd.f32 0.0, %v1074
  %v1076 = vpop.f32.mrf.mxu0
  %v1077 = vadd.f32 0.0, %v1076
  %1078 = vdwg.mxu0
  %v1079 = vadd.f32 %v161, %v1075
  %v1080 = vxor.u32 %v1079, 2147483648
  %v1081 = vmul.f32 %v1080, 1.442695
  %v1082 = vpow.pop %v1081
  %v1083 = vadd.f32 %v1082, 1.0
  %v1084 = vrcp.pop %v1083
  %v1085 = vmul.f32 1.0, %v1084
  %v1086 = vtanh.pop %v1079
  %v1087 = vmul.f32 %v1085, %v892
  %1089 = vrot.lane.b32.xlu0 %v1086, 64
  %v1090 = vpop.permute.xlu0 %1089
  %v1092 = vmul.f32 %v1085, %v1090
  %1094 = vrot.lane.b32.xlu0 %v1092, 32
  %v1095 = vpop.permute.xlu0 %1094
  %v1097 = vadd.f32 %v1087, %v1095
  %v1098 = vtanh.pop %v1097
  %1100 = vrot.lane.b32.xlu0 %v1098, 64
  %v1101 = vpop.permute.xlu0 %1100
  %v1103 = vmul.f32 %v1085, %v1101
  %1105 = vrot.lane.b32.xlu0 %v1103, 32
  %v1106 = vpop.permute.xlu0 %1105
  %v1107 = vsel %vm282, %v1106, 0
  %1109 = vmatprep.subr.mxu0 0.0
  %1110 = vmatpush1.msra.mxu0 0.0
  %1111 = vmatprep.subr.mxu0 0.0
  %1112 = vmatpush1.msra.mxu0 0.0
  %1113 = vmatprep.subr.mxu0 0.0
  %1114 = vmatpush1.msra.mxu0 0.0
  %1115 = vmatprep.subr.mxu0 0.0
  %1116 = vmatpush1.msra.mxu0 0.0
  %1117 = vmatprep.subr.mxu0 0.0
  %1118 = vmatpush1.msra.mxu0 0.0
  %1119 = vmatprep.subr.mxu0 0.0
  %1120 = vmatpush1.msra.mxu0 0.0
  %1121 = vmatprep.subr.mxu0 0.0
  %1122 = vmatpush1.msra.mxu0 0.0
  %1123 = vmatprep.subr.mxu0 0.0
  %1124 = vmatpush1.msra.mxu0 0.0
  %1125 = vmatprep.subr.mxu0 0.0
  %1126 = vmatpush1.msra.mxu0 0.0
  %1127 = vmatprep.subr.mxu0 0.0
  %1128 = vmatpush1.msra.mxu0 0.0
  %1129 = vmatprep.subr.mxu0 0.0
  %1130 = vmatpush1.msra.mxu0 0.0
  %1131 = vmatprep.subr.mxu0 0.0
  %1132 = vmatpush1.msra.mxu0 0.0
  %1133 = vmatprep.subr.mxu0 0.0
  %1134 = vmatpush1.msra.mxu0 %v19
  %1135 = vmatprep.subr.mxu0 0.0
  %1136 = vmatpush1.msra.mxu0 %v18
  %1137 = vmatprep.subr.mxu0 0.0
  %1138 = vmatpush1.msra.mxu0 %v17
  %1139 = vmatprep.subr.mxu0 0.0
  %1140 = vmatpush1.msra.mxu0 %v16
  %1141 = vmatprep.subr.mxu0 0.0
  %1142 = vmatpush2.msra.mxu0 0.0
  %1143 = vmatprep.subr.mxu0 0.0
  %1144 = vmatpush2.msra.mxu0 0.0
  %1145 = vmatprep.subr.mxu0 0.0
  %1146 = vmatpush2.msra.mxu0 0.0
  %1147 = vmatprep.subr.mxu0 0.0
  %1148 = vmatpush2.msra.mxu0 0.0
  %1149 = vmatprep.subr.mxu0 0.0
  %1150 = vmatpush2.msra.mxu0 0.0
  %1151 = vmatprep.subr.mxu0 0.0
  %1152 = vmatpush2.msra.mxu0 0.0
  %1153 = vmatprep.subr.mxu0 0.0
  %1154 = vmatpush2.msra.mxu0 0.0
  %1155 = vmatprep.subr.mxu0 0.0
  %1156 = vmatpush2.msra.mxu0 0.0
  %1157 = vmatprep.subr.mxu0 0.0
  %1158 = vmatpush2.msra.mxu0 0.0
  %1159 = vmatprep.subr.mxu0 0.0
  %1160 = vmatpush2.msra.mxu0 0.0
  %1161 = vmatprep.subr.mxu0 0.0
  %1162 = vmatpush2.msra.mxu0 0.0
  %1163 = vmatprep.subr.mxu0 0.0
  %1164 = vmatpush2.msra.mxu0 0.0
  %1165 = vmatprep.subr.mxu0 0.0
  %1166 = vmatpush2.msra.mxu0 0.0
  %1167 = vmatprep.subr.mxu0 0.0
  %1168 = vmatpush2.msra.mxu0 0.0
  %1169 = vmatprep.subr.mxu0 0.0
  %1170 = vmatpush2.msra.mxu0 0.0
  %1171 = vmatprep.subr.mxu0 0.0
  %1172 = vmatpush2.msra.mxu0 0.0
  %1173 = vmatprep.mubr.f32.mxu0 0.0
  %1174 = vmatmul.mubr.f32.gmra.mxu0 %v1107
  %v1175 = vpop.f32.mrf.mxu0
  %v1176 = vadd.f32 %v1077, %v1175
  %v1177 = vpop.f32.mrf.mxu0
  %1178 = vdwg.mxu0
  %v1179 = vadd.f32 %v1176, %v358
  %v1180 = vxor.u32 %v1179, 2147483648
  %v1181 = vmul.f32 %v1180, 1.442695
  %v1182 = vpow.pop %v1181
  %v1183 = vadd.f32 %v1182, 1.0
  %v1184 = vrcp.pop %v1183
  %v1185 = vmul.f32 1.0, %v1184
  %v1186 = vtanh.pop %v1179
  %v1187 = vmul.f32 %v1185, %v992
  %1189 = vrot.lane.b32.xlu0 %v1186, 64
  %v1190 = vpop.permute.xlu0 %1189
  %v1192 = vmul.f32 %v1185, %v1190
  %1194 = vrot.lane.b32.xlu0 %v1192, 32
  %v1195 = vpop.permute.xlu0 %1194
  %v1197 = vadd.f32 %v1187, %v1195
  %v1198 = vtanh.pop %v1197
  %1200 = vrot.lane.b32.xlu0 %v1198, 64
  %v1201 = vpop.permute.xlu0 %1200
  %v1203 = vmul.f32 %v1185, %v1201
  %1206 = vrot.lane.b32.xlu0 %v1203, 64
  %v1207 = vpop.permute.xlu0 %1206
  %v1209 = vsel %vm282, %v1106, %v1207
  %v1211 = vsel %vm179, %v1209, 0
  %1213 = vmatprep.subr.mxu0 0.0
  %1214 = vmatpush1.msra.mxu0 0.0
  %1215 = vmatprep.subr.mxu0 0.0
  %1216 = vmatpush1.msra.mxu0 0.0
  %1217 = vmatprep.subr.mxu0 0.0
  %1218 = vmatpush1.msra.mxu0 0.0
  %1219 = vmatprep.subr.mxu0 0.0
  %1220 = vmatpush1.msra.mxu0 0.0
  %1221 = vmatprep.subr.mxu0 0.0
  %1222 = vmatpush1.msra.mxu0 0.0
  %1223 = vmatprep.subr.mxu0 0.0
  %1224 = vmatpush1.msra.mxu0 0.0
  %1225 = vmatprep.subr.mxu0 0.0
  %1226 = vmatpush1.msra.mxu0 0.0
  %1227 = vmatprep.subr.mxu0 0.0
  %1228 = vmatpush1.msra.mxu0 0.0
  %1229 = vmatprep.subr.mxu0 %v36
  %1230 = vmatpush1.msra.mxu0 %v35
  %1231 = vmatprep.subr.mxu0 %v34
  %1232 = vmatpush1.msra.mxu0 %v33
  %1233 = vmatprep.subr.mxu0 %v32
  %1234 = vmatpush1.msra.mxu0 %v31
  %1235 = vmatprep.subr.mxu0 %v30
  %1236 = vmatpush1.msra.mxu0 %v29
  %1237 = vmatprep.subr.mxu0 %v28
  %1238 = vmatpush1.msra.mxu0 %v27
  %1239 = vmatprep.subr.mxu0 %v26
  %1240 = vmatpush1.msra.mxu0 %v25
  %1241 = vmatprep.subr.mxu0 %v24
  %1242 = vmatpush1.msra.mxu0 %v23
  %1243 = vmatprep.subr.mxu0 %v22
  %1244 = vmatpush1.msra.mxu0 %v21
  %1245 = vmatprep.subr.mxu0 0.0
  %1246 = vmatpush2.msra.mxu0 0.0
  %1247 = vmatprep.subr.mxu0 0.0
  %1248 = vmatpush2.msra.mxu0 0.0
  %1249 = vmatprep.subr.mxu0 0.0
  %1250 = vmatpush2.msra.mxu0 0.0
  %1251 = vmatprep.subr.mxu0 0.0
  %1252 = vmatpush2.msra.mxu0 0.0
  %1253 = vmatprep.subr.mxu0 0.0
  %1254 = vmatpush2.msra.mxu0 0.0
  %1255 = vmatprep.subr.mxu0 0.0
  %1256 = vmatpush2.msra.mxu0 0.0
  %1257 = vmatprep.subr.mxu0 0.0
  %1258 = vmatpush2.msra.mxu0 0.0
  %1259 = vmatprep.subr.mxu0 0.0
  %1260 = vmatpush2.msra.mxu0 0.0
  %1261 = vmatprep.subr.mxu0 0.0
  %1262 = vmatpush2.msra.mxu0 0.0
  %1263 = vmatprep.subr.mxu0 0.0
  %1264 = vmatpush2.msra.mxu0 0.0
  %1265 = vmatprep.subr.mxu0 0.0
  %1266 = vmatpush2.msra.mxu0 0.0
  %1267 = vmatprep.subr.mxu0 0.0
  %1268 = vmatpush2.msra.mxu0 0.0
  %1269 = vmatprep.subr.mxu0 0.0
  %1270 = vmatpush2.msra.mxu0 0.0
  %1271 = vmatprep.subr.mxu0 0.0
  %1272 = vmatpush2.msra.mxu0 0.0
  %1273 = vmatprep.subr.mxu0 0.0
  %1274 = vmatpush2.msra.mxu0 0.0
  %1275 = vmatprep.subr.mxu0 0.0
  %1276 = vmatpush2.msra.mxu0 0.0
  %1277 = vmatprep.mubr.f32.mxu0 0.0
  %1278 = vmatmul.mubr.f32.gmra.mxu0 %v1211
  %v1279 = vpop.f32.mrf.mxu0
  %v1280 = vadd.f32 0.0, %v1279
  %v1281 = vpop.f32.mrf.mxu0
  %v1282 = vadd.f32 0.0, %v1281
  %1283 = vdwg.mxu0
  %v1284 = vadd.f32 %v166, %v1280
  %v1285 = vxor.u32 %v1284, 2147483648
  %v1286 = vmul.f32 %v1285, 1.442695
  %v1287 = vpow.pop %v1286
  %v1288 = vadd.f32 %v1287, 1.0
  %v1289 = vrcp.pop %v1288
  %v1290 = vmul.f32 1.0, %v1289
  %v1291 = vtanh.pop %v1284
  %v1292 = vmul.f32 %v1290, %v1097
  %1294 = vrot.lane.b32.xlu0 %v1291, 64
  %v1295 = vpop.permute.xlu0 %1294
  %v1297 = vmul.f32 %v1290, %v1295
  %1299 = vrot.lane.b32.xlu0 %v1297, 32
  %v1300 = vpop.permute.xlu0 %1299
  %v1302 = vadd.f32 %v1292, %v1300
  %v1303 = vtanh.pop %v1302
  %1305 = vrot.lane.b32.xlu0 %v1303, 64
  %v1306 = vpop.permute.xlu0 %1305
  %v1308 = vmul.f32 %v1290, %v1306
  %1310 = vrot.lane.b32.xlu0 %v1308, 32
  %v1311 = vpop.permute.xlu0 %1310
  %v1312 = vsel %vm282, %v1311, 0
  %1314 = vmatprep.subr.mxu0 0.0
  %1315 = vmatpush1.msra.mxu0 0.0
  %1316 = vmatprep.subr.mxu0 0.0
  %1317 = vmatpush1.msra.mxu0 0.0
  %1318 = vmatprep.subr.mxu0 0.0
  %1319 = vmatpush1.msra.mxu0 0.0
  %1320 = vmatprep.subr.mxu0 0.0
  %1321 = vmatpush1.msra.mxu0 0.0
  %1322 = vmatprep.subr.mxu0 0.0
  %1323 = vmatpush1.msra.mxu0 0.0
  %1324 = vmatprep.subr.mxu0 0.0
  %1325 = vmatpush1.msra.mxu0 0.0
  %1326 = vmatprep.subr.mxu0 0.0
  %1327 = vmatpush1.msra.mxu0 0.0
  %1328 = vmatprep.subr.mxu0 0.0
  %1329 = vmatpush1.msra.mxu0 0.0
  %1330 = vmatprep.subr.mxu0 0.0
  %1331 = vmatpush1.msra.mxu0 0.0
  %1332 = vmatprep.subr.mxu0 0.0
  %1333 = vmatpush1.msra.mxu0 0.0
  %1334 = vmatprep.subr.mxu0 0.0
  %1335 = vmatpush1.msra.mxu0 0.0
  %1336 = vmatprep.subr.mxu0 0.0
  %1337 = vmatpush1.msra.mxu0 0.0
  %1338 = vmatprep.subr.mxu0 0.0
  %1339 = vmatpush1.msra.mxu0 %v19
  %1340 = vmatprep.subr.mxu0 0.0
  %1341 = vmatpush1.msra.mxu0 %v18
  %1342 = vmatprep.subr.mxu0 0.0
  %1343 = vmatpush1.msra.mxu0 %v17
  %1344 = vmatprep.subr.mxu0 0.0
  %1345 = vmatpush1.msra.mxu0 %v16
  %1346 = vmatprep.subr.mxu0 0.0
  %1347 = vmatpush2.msra.mxu0 0.0
  %1348 = vmatprep.subr.mxu0 0.0
  %1349 = vmatpush2.msra.mxu0 0.0
  %1350 = vmatprep.subr.mxu0 0.0
  %1351 = vmatpush2.msra.mxu0 0.0
  %1352 = vmatprep.subr.mxu0 0.0
  %1353 = vmatpush2.msra.mxu0 0.0
  %1354 = vmatprep.subr.mxu0 0.0
  %1355 = vmatpush2.msra.mxu0 0.0
  %1356 = vmatprep.subr.mxu0 0.0
  %1357 = vmatpush2.msra.mxu0 0.0
  %1358 = vmatprep.subr.mxu0 0.0
  %1359 = vmatpush2.msra.mxu0 0.0
  %1360 = vmatprep.subr.mxu0 0.0
  %1361 = vmatpush2.msra.mxu0 0.0
  %1362 = vmatprep.subr.mxu0 0.0
  %1363 = vmatpush2.msra.mxu0 0.0
  %1364 = vmatprep.subr.mxu0 0.0
  %1365 = vmatpush2.msra.mxu0 0.0
  %1366 = vmatprep.subr.mxu0 0.0
  %1367 = vmatpush2.msra.mxu0 0.0
  %1368 = vmatprep.subr.mxu0 0.0
  %1369 = vmatpush2.msra.mxu0 0.0
  %1370 = vmatprep.subr.mxu0 0.0
  %1371 = vmatpush2.msra.mxu0 0.0
  %1372 = vmatprep.subr.mxu0 0.0
  %1373 = vmatpush2.msra.mxu0 0.0
  %1374 = vmatprep.subr.mxu0 0.0
  %1375 = vmatpush2.msra.mxu0 0.0
  %1376 = vmatprep.subr.mxu0 0.0
  %1377 = vmatpush2.msra.mxu0 0.0
  %1378 = vmatprep.mubr.f32.mxu0 0.0
  %1379 = vmatmul.mubr.f32.gmra.mxu0 %v1312
  %v1380 = vpop.f32.mrf.mxu0
  %v1381 = vadd.f32 %v1282, %v1380
  %v1382 = vpop.f32.mrf.mxu0
  %1383 = vdwg.mxu0
  %v1384 = vadd.f32 %v1381, %v358
  %v1385 = vxor.u32 %v1384, 2147483648
  %v1386 = vmul.f32 %v1385, 1.442695
  %v1387 = vpow.pop %v1386
  %v1388 = vadd.f32 %v1387, 1.0
  %v1389 = vrcp.pop %v1388
  %v1390 = vmul.f32 1.0, %v1389
  %v1391 = vtanh.pop %v1384
  %v1392 = vmul.f32 %v1390, %v1197
  %1394 = vrot.lane.b32.xlu0 %v1391, 64
  %v1395 = vpop.permute.xlu0 %1394
  %v1397 = vmul.f32 %v1390, %v1395
  %1399 = vrot.lane.b32.xlu0 %v1397, 32
  %v1400 = vpop.permute.xlu0 %1399
  %v1402 = vadd.f32 %v1392, %v1400
  %v1403 = vtanh.pop %v1402
  %1405 = vrot.lane.b32.xlu0 %v1403, 64
  %v1406 = vpop.permute.xlu0 %1405
  %v1408 = vmul.f32 %v1390, %v1406
  %1411 = vrot.lane.b32.xlu0 %v1408, 64
  %v1412 = vpop.permute.xlu0 %1411
  %v1414 = vsel %vm282, %v1311, %v1412
  %v1416 = vsel %vm179, %v1414, 0
  %1418 = vmatprep.subr.mxu0 0.0
  %1419 = vmatpush1.msra.mxu0 0.0
  %1420 = vmatprep.subr.mxu0 0.0
  %1421 = vmatpush1.msra.mxu0 0.0
  %1422 = vmatprep.subr.mxu0 0.0
  %1423 = vmatpush1.msra.mxu0 0.0
  %1424 = vmatprep.subr.mxu0 0.0
  %1425 = vmatpush1.msra.mxu0 0.0
  %1426 = vmatprep.subr.mxu0 0.0
  %1427 = vmatpush1.msra.mxu0 0.0
  %1428 = vmatprep.subr.mxu0 0.0
  %1429 = vmatpush1.msra.mxu0 0.0
  %1430 = vmatprep.subr.mxu0 0.0
  %1431 = vmatpush1.msra.mxu0 0.0
  %1432 = vmatprep.subr.mxu0 0.0
  %1433 = vmatpush1.msra.mxu0 0.0
  %1434 = vmatprep.subr.mxu0 %v36
  %1435 = vmatpush1.msra.mxu0 %v35
  %1436 = vmatprep.subr.mxu0 %v34
  %1437 = vmatpush1.msra.mxu0 %v33
  %1438 = vmatprep.subr.mxu0 %v32
  %1439 = vmatpush1.msra.mxu0 %v31
  %1440 = vmatprep.subr.mxu0 %v30
  %1441 = vmatpush1.msra.mxu0 %v29
  %1442 = vmatprep.subr.mxu0 %v28
  %1443 = vmatpush1.msra.mxu0 %v27
  %1444 = vmatprep.subr.mxu0 %v26
  %1445 = vmatpush1.msra.mxu0 %v25
  %1446 = vmatprep.subr.mxu0 %v24
  %1447 = vmatpush1.msra.mxu0 %v23
  %1448 = vmatprep.subr.mxu0 %v22
  %1449 = vmatpush1.msra.mxu0 %v21
  %1450 = vmatprep.subr.mxu0 0.0
  %1451 = vmatpush2.msra.mxu0 0.0
  %1452 = vmatprep.subr.mxu0 0.0
  %1453 = vmatpush2.msra.mxu0 0.0
  %1454 = vmatprep.subr.mxu0 0.0
  %1455 = vmatpush2.msra.mxu0 0.0
  %1456 = vmatprep.subr.mxu0 0.0
  %1457 = vmatpush2.msra.mxu0 0.0
  %1458 = vmatprep.subr.mxu0 0.0
  %1459 = vmatpush2.msra.mxu0 0.0
  %1460 = vmatprep.subr.mxu0 0.0
  %1461 = vmatpush2.msra.mxu0 0.0
  %1462 = vmatprep.subr.mxu0 0.0
  %1463 = vmatpush2.msra.mxu0 0.0
  %1464 = vmatprep.subr.mxu0 0.0
  %1465 = vmatpush2.msra.mxu0 0.0
  %1466 = vmatprep.subr.mxu0 0.0
  %1467 = vmatpush2.msra.mxu0 0.0
  %1468 = vmatprep.subr.mxu0 0.0
  %1469 = vmatpush2.msra.mxu0 0.0
  %1470 = vmatprep.subr.mxu0 0.0
  %1471 = vmatpush2.msra.mxu0 0.0
  %1472 = vmatprep.subr.mxu0 0.0
  %1473 = vmatpush2.msra.mxu0 0.0
  %1474 = vmatprep.subr.mxu0 0.0
  %1475 = vmatpush2.msra.mxu0 0.0
  %1476 = vmatprep.subr.mxu0 0.0
  %1477 = vmatpush2.msra.mxu0 0.0
  %1478 = vmatprep.subr.mxu0 0.0
  %1479 = vmatpush2.msra.mxu0 0.0
  %1480 = vmatprep.subr.mxu0 0.0
  %1481 = vmatpush2.msra.mxu0 0.0
  %1482 = vmatprep.mubr.f32.mxu0 0.0
  %1483 = vmatmul.mubr.f32.gmra.mxu0 %v1416
  %v1484 = vpop.f32.mrf.mxu0
  %v1485 = vadd.f32 0.0, %v1484
  %v1486 = vpop.f32.mrf.mxu0
  %v1487 = vadd.f32 0.0, %v1486
  %1488 = vdwg.mxu0
  %v1489 = vadd.f32 %v171, %v1485
  %v1490 = vxor.u32 %v1489, 2147483648
  %v1491 = vmul.f32 %v1490, 1.442695
  %v1492 = vpow.pop %v1491
  %v1493 = vadd.f32 %v1492, 1.0
  %v1494 = vrcp.pop %v1493
  %v1495 = vmul.f32 1.0, %v1494
  %v1496 = vtanh.pop %v1489
  %v1497 = vmul.f32 %v1495, %v1302
  %1499 = vrot.lane.b32.xlu0 %v1496, 64
  %v1500 = vpop.permute.xlu0 %1499
  %v1502 = vmul.f32 %v1495, %v1500
  %1504 = vrot.lane.b32.xlu0 %v1502, 32
  %v1505 = vpop.permute.xlu0 %1504
  %v1507 = vadd.f32 %v1497, %v1505
  %v1508 = vtanh.pop %v1507
  %1510 = vrot.lane.b32.xlu0 %v1508, 64
  %v1511 = vpop.permute.xlu0 %1510
  %v1513 = vmul.f32 %v1495, %v1511
  %1515 = vrot.lane.b32.xlu0 %v1513, 32
  %v1516 = vpop.permute.xlu0 %1515
  %v1517 = vsel %vm282, %v1516, 0
  %1519 = vmatprep.subr.mxu0 0.0
  %1520 = vmatpush1.msra.mxu0 0.0
  %1521 = vmatprep.subr.mxu0 0.0
  %1522 = vmatpush1.msra.mxu0 0.0
  %1523 = vmatprep.subr.mxu0 0.0
  %1524 = vmatpush1.msra.mxu0 0.0
  %1525 = vmatprep.subr.mxu0 0.0
  %1526 = vmatpush1.msra.mxu0 0.0
  %1527 = vmatprep.subr.mxu0 0.0
  %1528 = vmatpush1.msra.mxu0 0.0
  %1529 = vmatprep.subr.mxu0 0.0
  %1530 = vmatpush1.msra.mxu0 0.0
  %1531 = vmatprep.subr.mxu0 0.0
  %1532 = vmatpush1.msra.mxu0 0.0
  %1533 = vmatprep.subr.mxu0 0.0
  %1534 = vmatpush1.msra.mxu0 0.0
  %1535 = vmatprep.subr.mxu0 0.0
  %1536 = vmatpush1.msra.mxu0 0.0
  %1537 = vmatprep.subr.mxu0 0.0
  %1538 = vmatpush1.msra.mxu0 0.0
  %1539 = vmatprep.subr.mxu0 0.0
  %1540 = vmatpush1.msra.mxu0 0.0
  %1541 = vmatprep.subr.mxu0 0.0
  %1542 = vmatpush1.msra.mxu0 0.0
  %1543 = vmatprep.subr.mxu0 0.0
  %1544 = vmatpush1.msra.mxu0 %v19
  %1545 = vmatprep.subr.mxu0 0.0
  %1546 = vmatpush1.msra.mxu0 %v18
  %1547 = vmatprep.subr.mxu0 0.0
  %1548 = vmatpush1.msra.mxu0 %v17
  %1549 = vmatprep.subr.mxu0 0.0
  %1550 = vmatpush1.msra.mxu0 %v16
  %1551 = vmatprep.subr.mxu0 0.0
  %1552 = vmatpush2.msra.mxu0 0.0
  %1553 = vmatprep.subr.mxu0 0.0
  %1554 = vmatpush2.msra.mxu0 0.0
  %1555 = vmatprep.subr.mxu0 0.0
  %1556 = vmatpush2.msra.mxu0 0.0
  %1557 = vmatprep.subr.mxu0 0.0
  %1558 = vmatpush2.msra.mxu0 0.0
  %1559 = vmatprep.subr.mxu0 0.0
  %1560 = vmatpush2.msra.mxu0 0.0
  %1561 = vmatprep.subr.mxu0 0.0
  %1562 = vmatpush2.msra.mxu0 0.0
  %1563 = vmatprep.subr.mxu0 0.0
  %1564 = vmatpush2.msra.mxu0 0.0
  %1565 = vmatprep.subr.mxu0 0.0
  %1566 = vmatpush2.msra.mxu0 0.0
  %1567 = vmatprep.subr.mxu0 0.0
  %1568 = vmatpush2.msra.mxu0 0.0
  %1569 = vmatprep.subr.mxu0 0.0
  %1570 = vmatpush2.msra.mxu0 0.0
  %1571 = vmatprep.subr.mxu0 0.0
  %1572 = vmatpush2.msra.mxu0 0.0
  %1573 = vmatprep.subr.mxu0 0.0
  %1574 = vmatpush2.msra.mxu0 0.0
  %1575 = vmatprep.subr.mxu0 0.0
  %1576 = vmatpush2.msra.mxu0 0.0
  %1577 = vmatprep.subr.mxu0 0.0
  %1578 = vmatpush2.msra.mxu0 0.0
  %1579 = vmatprep.subr.mxu0 0.0
  %1580 = vmatpush2.msra.mxu0 0.0
  %1581 = vmatprep.subr.mxu0 0.0
  %1582 = vmatpush2.msra.mxu0 0.0
  %1583 = vmatprep.mubr.f32.mxu0 0.0
  %1584 = vmatmul.mubr.f32.gmra.mxu0 %v1517
  %v1585 = vpop.f32.mrf.mxu0
  %v1586 = vadd.f32 %v1487, %v1585
  %v1587 = vpop.f32.mrf.mxu0
  %1588 = vdwg.mxu0
  %v1589 = vadd.f32 %v1586, %v358
  %v1590 = vxor.u32 %v1589, 2147483648
  %v1591 = vmul.f32 %v1590, 1.442695
  %v1592 = vpow.pop %v1591
  %v1593 = vadd.f32 %v1592, 1.0
  %v1594 = vrcp.pop %v1593
  %v1595 = vmul.f32 1.0, %v1594
  %v1596 = vtanh.pop %v1589
  %v1597 = vmul.f32 %v1595, %v1402
  %1599 = vrot.lane.b32.xlu0 %v1596, 64
  %v1600 = vpop.permute.xlu0 %1599
  %v1602 = vmul.f32 %v1595, %v1600
  %1604 = vrot.lane.b32.xlu0 %v1602, 32
  %v1605 = vpop.permute.xlu0 %1604
  %v1607 = vadd.f32 %v1597, %v1605
  %v1608 = vtanh.pop %v1607
  %1610 = vrot.lane.b32.xlu0 %v1608, 64
  %v1611 = vpop.permute.xlu0 %1610
  %v1613 = vmul.f32 %v1595, %v1611
  %1616 = vrot.lane.b32.xlu0 %v1613, 64
  %v1617 = vpop.permute.xlu0 %1616
  %v1619 = vsel %vm282, %v1516, %v1617
  %v1621 = vsel %vm179, %v1619, 0
  %1623 = vmatprep.subr.mxu0 0.0
  %1624 = vmatpush1.msra.mxu0 0.0
  %1625 = vmatprep.subr.mxu0 0.0
  %1626 = vmatpush1.msra.mxu0 0.0
  %1627 = vmatprep.subr.mxu0 0.0
  %1628 = vmatpush1.msra.mxu0 0.0
  %1629 = vmatprep.subr.mxu0 0.0
  %1630 = vmatpush1.msra.mxu0 0.0
  %1631 = vmatprep.subr.mxu0 0.0
  %1632 = vmatpush1.msra.mxu0 0.0
  %1633 = vmatprep.subr.mxu0 0.0
  %1634 = vmatpush1.msra.mxu0 0.0
  %1635 = vmatprep.subr.mxu0 0.0
  %1636 = vmatpush1.msra.mxu0 0.0
  %1637 = vmatprep.subr.mxu0 0.0
  %1638 = vmatpush1.msra.mxu0 0.0
  %1639 = vmatprep.subr.mxu0 %v36
  %1640 = vmatpush1.msra.mxu0 %v35
  %1641 = vmatprep.subr.mxu0 %v34
  %1642 = vmatpush1.msra.mxu0 %v33
  %1643 = vmatprep.subr.mxu0 %v32
  %1644 = vmatpush1.msra.mxu0 %v31
  %1645 = vmatprep.subr.mxu0 %v30
  %1646 = vmatpush1.msra.mxu0 %v29
  %1647 = vmatprep.subr.mxu0 %v28
  %1648 = vmatpush1.msra.mxu0 %v27
  %1649 = vmatprep.subr.mxu0 %v26
  %1650 = vmatpush1.msra.mxu0 %v25
  %1651 = vmatprep.subr.mxu0 %v24
  %1652 = vmatpush1.msra.mxu0 %v23
  %1653 = vmatprep.subr.mxu0 %v22
  %1654 = vmatpush1.msra.mxu0 %v21
  %1655 = vmatprep.subr.mxu0 0.0
  %1656 = vmatpush2.msra.mxu0 0.0
  %1657 = vmatprep.subr.mxu0 0.0
  %1658 = vmatpush2.msra.mxu0 0.0
  %1659 = vmatprep.subr.mxu0 0.0
  %1660 = vmatpush2.msra.mxu0 0.0
  %1661 = vmatprep.subr.mxu0 0.0
  %1662 = vmatpush2.msra.mxu0 0.0
  %1663 = vmatprep.subr.mxu0 0.0
  %1664 = vmatpush2.msra.mxu0 0.0
  %1665 = vmatprep.subr.mxu0 0.0
  %1666 = vmatpush2.msra.mxu0 0.0
  %1667 = vmatprep.subr.mxu0 0.0
  %1668 = vmatpush2.msra.mxu0 0.0
  %1669 = vmatprep.subr.mxu0 0.0
  %1670 = vmatpush2.msra.mxu0 0.0
  %1671 = vmatprep.subr.mxu0 0.0
  %1672 = vmatpush2.msra.mxu0 0.0
  %1673 = vmatprep.subr.mxu0 0.0
  %1674 = vmatpush2.msra.mxu0 0.0
  %1675 = vmatprep.subr.mxu0 0.0
  %1676 = vmatpush2.msra.mxu0 0.0
  %1677 = vmatprep.subr.mxu0 0.0
  %1678 = vmatpush2.msra.mxu0 0.0
  %1679 = vmatprep.subr.mxu0 0.0
  %1680 = vmatpush2.msra.mxu0 0.0
  %1681 = vmatprep.subr.mxu0 0.0
  %1682 = vmatpush2.msra.mxu0 0.0
  %1683 = vmatprep.subr.mxu0 0.0
  %1684 = vmatpush2.msra.mxu0 0.0
  %1685 = vmatprep.subr.mxu0 0.0
  %1686 = vmatpush2.msra.mxu0 0.0
  %1687 = vmatprep.mubr.f32.mxu0 0.0
  %1688 = vmatmul.mubr.f32.gmra.mxu0 %v1621
  %v1689 = vpop.f32.mrf.mxu0
  %v1690 = vadd.f32 0.0, %v1689
  %v1691 = vpop.f32.mrf.mxu0
  %v1692 = vadd.f32 0.0, %v1691
  %1693 = vdwg.mxu0
  %v1694 = vadd.f32 %v176, %v1690
  %v1695 = vxor.u32 %v1694, 2147483648
  %v1696 = vmul.f32 %v1695, 1.442695
  %v1697 = vpow.pop %v1696
  %v1698 = vadd.f32 %v1697, 1.0
  %v1699 = vrcp.pop %v1698
  %v1700 = vmul.f32 1.0, %v1699
  %v1701 = vtanh.pop %v1694
  %v1702 = vmul.f32 %v1700, %v1507
  %1704 = vrot.lane.b32.xlu0 %v1701, 64
  %v1705 = vpop.permute.xlu0 %1704
  %v1707 = vmul.f32 %v1700, %v1705
  %1709 = vrot.lane.b32.xlu0 %v1707, 32
  %v1710 = vpop.permute.xlu0 %1709
  %v1712 = vadd.f32 %v1702, %v1710
  %v1713 = vtanh.pop %v1712
  %1715 = vrot.lane.b32.xlu0 %v1713, 64
  %v1716 = vpop.permute.xlu0 %1715
  %v1718 = vmul.f32 %v1700, %v1716
  %1720 = vrot.lane.b32.xlu0 %v1718, 32
  %v1721 = vpop.permute.xlu0 %1720
  %v1722 = vsel %vm282, %v1721, 0
  %1724 = vmatprep.subr.mxu0 0.0
  %1725 = vmatpush1.msra.mxu0 0.0
  %1726 = vmatprep.subr.mxu0 0.0
  %1727 = vmatpush1.msra.mxu0 0.0
  %1728 = vmatprep.subr.mxu0 0.0
  %1729 = vmatpush1.msra.mxu0 0.0
  %1730 = vmatprep.subr.mxu0 0.0
  %1731 = vmatpush1.msra.mxu0 0.0
  %1732 = vmatprep.subr.mxu0 0.0
  %1733 = vmatpush1.msra.mxu0 0.0
  %1734 = vmatprep.subr.mxu0 0.0
  %1735 = vmatpush1.msra.mxu0 0.0
  %1736 = vmatprep.subr.mxu0 0.0
  %1737 = vmatpush1.msra.mxu0 0.0
  %1738 = vmatprep.subr.mxu0 0.0
  %1739 = vmatpush1.msra.mxu0 0.0
  %1740 = vmatprep.subr.mxu0 0.0
  %1741 = vmatpush1.msra.mxu0 0.0
  %1742 = vmatprep.subr.mxu0 0.0
  %1743 = vmatpush1.msra.mxu0 0.0
  %1744 = vmatprep.subr.mxu0 0.0
  %1745 = vmatpush1.msra.mxu0 0.0
  %1746 = vmatprep.subr.mxu0 0.0
  %1747 = vmatpush1.msra.mxu0 0.0
  %1748 = vmatprep.subr.mxu0 0.0
  %1749 = vmatpush1.msra.mxu0 %v19
  %1750 = vmatprep.subr.mxu0 0.0
  %1751 = vmatpush1.msra.mxu0 %v18
  %1752 = vmatprep.subr.mxu0 0.0
  %1753 = vmatpush1.msra.mxu0 %v17
  %1754 = vmatprep.subr.mxu0 0.0
  %1755 = vmatpush1.msra.mxu0 %v16
  %1756 = vmatprep.subr.mxu0 0.0
  %1757 = vmatpush2.msra.mxu0 0.0
  %1758 = vmatprep.subr.mxu0 0.0
  %1759 = vmatpush2.msra.mxu0 0.0
  %1760 = vmatprep.subr.mxu0 0.0
  %1761 = vmatpush2.msra.mxu0 0.0
  %1762 = vmatprep.subr.mxu0 0.0
  %1763 = vmatpush2.msra.mxu0 0.0
  %1764 = vmatprep.subr.mxu0 0.0
  %1765 = vmatpush2.msra.mxu0 0.0
  %1766 = vmatprep.subr.mxu0 0.0
  %1767 = vmatpush2.msra.mxu0 0.0
  %1768 = vmatprep.subr.mxu0 0.0
  %1769 = vmatpush2.msra.mxu0 0.0
  %1770 = vmatprep.subr.mxu0 0.0
  %1771 = vmatpush2.msra.mxu0 0.0
  %1772 = vmatprep.subr.mxu0 0.0
  %1773 = vmatpush2.msra.mxu0 0.0
  %1774 = vmatprep.subr.mxu0 0.0
  %1775 = vmatpush2.msra.mxu0 0.0
  %1776 = vmatprep.subr.mxu0 0.0
  %1777 = vmatpush2.msra.mxu0 0.0
  %1778 = vmatprep.subr.mxu0 0.0
  %1779 = vmatpush2.msra.mxu0 0.0
  %1780 = vmatprep.subr.mxu0 0.0
  %1781 = vmatpush2.msra.mxu0 0.0
  %1782 = vmatprep.subr.mxu0 0.0
  %1783 = vmatpush2.msra.mxu0 0.0
  %1784 = vmatprep.subr.mxu0 0.0
  %1785 = vmatpush2.msra.mxu0 0.0
  %1786 = vmatprep.subr.mxu0 0.0
  %1787 = vmatpush2.msra.mxu0 0.0
  %1788 = vmatprep.mubr.f32.mxu0 0.0
  %1789 = vmatmul.mubr.f32.gmra.mxu0 %v1722
  %v1790 = vpop.f32.mrf.mxu0
  %v1791 = vadd.f32 %v1692, %v1790
  %v1792 = vpop.f32.mrf.mxu0
  %1793 = vdwg.mxu0
  %v1794 = vadd.f32 %v1791, %v358
  %v1795 = vxor.u32 %v1794, 2147483648
  %v1796 = vmul.f32 %v1795, 1.442695
  %v1797 = vpow.pop %v1796
  %v1798 = vadd.f32 %v1797, 1.0
  %v1799 = vrcp.pop %v1798
  %v1800 = vmul.f32 1.0, %v1799
  %v1801 = vtanh.pop %v1794
  %v1802 = vmul.f32 %v1800, %v1607
  %1804 = vrot.lane.b32.xlu0 %v1801, 64
  %v1805 = vpop.permute.xlu0 %1804
  %v1807 = vmul.f32 %v1800, %v1805
  %1809 = vrot.lane.b32.xlu0 %v1807, 32
  %v1810 = vpop.permute.xlu0 %1809
  %v1812 = vadd.f32 %v1802, %v1810
  %v1813 = vtanh.pop %v1812
  %1815 = vrot.lane.b32.xlu0 %v1813, 64
  %v1816 = vpop.permute.xlu0 %1815
  %v1818 = vmul.f32 %v1800, %v1816
  %v1819 = vlaneseq
  %v1820 = vshrl.u32 %v1819, 7
  %v1821 = vsub.s32 2, %v1820
  %v1822 = vrot.slane %v20, %v1821
  %1824 = vrot.lane.b32.xlu0 %v1822, 96
  %v1825 = vpop.permute.xlu0 %1824
  %v1827 = vmul.f32 %v1818, %v1825
  %1829 = vrot.lane.b32.xlu0 %v1827, 32
  %v1830 = vpop.permute.xlu0 %1829
  %v1832 = vsel %vm282, %v1830, 0.0
  %1833 = vadd.xlane.f32.xlu0 %v1832
  %v1834 = vpop.xlane.xlu0 %1833
  %v1835 = vadd.f32 %v1834, %v1822
  %1837 = vrot.lane.b32.xlu0 %v1835, 96
  %v1838 = vpop.permute.xlu0 %1837
  %vm1840 = vcmask 7168
  %1841 = vst.msk [vmem:[%s3] sm:$0xff] %vm1840, %v1838
  // Predicated region
  $region14: #{lstm_regressor_forward.1} parent=0 // pred_check
    _
  $region15: #{lstm_regressor_forward.1} parent=0 // pred_check_branch
    %1843 = sbr.rel (0) target = $region17
  $region16: #{lstm_regressor_forward.1} parent=0 // pred_region
    _
  $region17: #{lstm_regressor_forward.1} parent=0 // pred_fallthru
    _
  // Predicated region
  $region18: #{lstm_regressor_forward.1} parent=0 // pred_check
    _
  $region19: #{lstm_regressor_forward.1} parent=0 // pred_check_branch
    %1845 = sbr.rel (0) target = $region21
  $region20: #{lstm_regressor_forward.1} parent=0 // pred_region
    _
  $region21: #{lstm_regressor_forward.1} parent=0 // pred_fallthru
    _

</llo_original>
